<compile_context>
chip_gen: v6e
topology: v6e:2x2x1
jax: 0.10.0
libtpu: 0.0.40
codegen_flags: <defaults>
</compile_context>

<pallas_src>
import functools

import jax
import jax.numpy as jnp
from jax import lax
from jax.experimental import pallas as pl
from jax.experimental.pallas import tpu as pltpu

LANE = 128          # TPU lane width
TM = 8              # decode steps per grid block (sublane-aligned)
_NEG = -1e30        # "minus infinity" for masked softmax / log-softmax lanes


def _round_up(x, m):
    return (x + m - 1) // m * m


# ----------------------------------------------------------------------------
# Kernel: one grid step processes TM independent decode steps
# ----------------------------------------------------------------------------
def _attn_decoder_kernel(toks_ref,                                   # SMEM (prefetch)
                         emb_ref, wa_ref, wc_ref, wo_ref,            # params (resident)
                         ba_ref, bc_ref, bo_ref, hid_ref, enc_ref,   # params / state
                         logp_ref, attw_ref,                         # outputs
                         emb_scratch,                                # VMEM scratch
                         *, H_pad, L, V):
    blk = pl.program_id(0)
    base = blk * TM

    # Fused embedding lookup (nn.Dropout is eval-mode identity).
    # TODO(synk): training-mode dropout (stateful PRNG mask) intentionally omitted.
    for r in range(TM):
        tok = toks_ref[base + r]
        emb_scratch[pl.ds(r, 1), :] = emb_ref[pl.ds(tok, 1), :]
    emb = emb_scratch[...]                                           # (TM, H_pad) f32
    hid = hid_ref[...]                                               # (1,  H_pad) f32

    # attn_weights = softmax(cat([emb, hid]) @ W_attn + b_attn)
    #   split the concat into two K=H_pad dots (no (TM, 2*H_pad) materialization)
    wa_top = wa_ref[pl.ds(0, H_pad), :].astype(jnp.float32)
    wa_bot = wa_ref[pl.ds(H_pad, H_pad), :].astype(jnp.float32)
    scores = (jnp.dot(emb, wa_top, preferred_element_type=jnp.float32)
              + jnp.dot(hid, wa_bot, preferred_element_type=jnp.float32)
              + ba_ref[...])
    lane_l = lax.broadcasted_iota(jnp.int32, scores.shape, 1)
    scores = jnp.where(lane_l < L, scores, _NEG)                     # mask padded lanes
    m1 = jnp.max(scores, axis=1, keepdims=True)
    e1 = jnp.exp(scores - m1)
    attw = e1 / jnp.sum(e1, axis=1, keepdims=True)                   # exact divide
    attw_ref[...] = attw

    # attn_applied = attn_weights @ encoder_outputs
    attn_applied = jnp.dot(attw, enc_ref[...].astype(jnp.float32),
                           preferred_element_type=jnp.float32)       # (TM, H_pad)

    # output = relu(cat([emb, attn_applied]) @ W_combine + b_combine)
    wc_top = wc_ref[pl.ds(0, H_pad), :].astype(jnp.float32)
    wc_bot = wc_ref[pl.ds(H_pad, H_pad), :].astype(jnp.float32)
    comb = (jnp.dot(emb, wc_top, preferred_element_type=jnp.float32)
            + jnp.dot(attn_applied, wc_bot, preferred_element_type=jnp.float32)
            + bc_ref[...])
    comb = jnp.maximum(comb, 0.0)

    # log_softmax(comb @ W_out + b_out)
    logits = (jnp.dot(comb, wo_ref[...].astype(jnp.float32),
                      preferred_element_type=jnp.float32) + bo_ref[...])
    lane_v = lax.broadcasted_iota(jnp.int32, logits.shape, 1)
    logits = jnp.where(lane_v < V, logits, _NEG)
    m2 = jnp.max(logits, axis=1, keepdims=True)
    lse = jnp.log(jnp.sum(jnp.exp(logits - m2), axis=1, keepdims=True)) + m2
    logp_ref[...] = logits - lse


# ----------------------------------------------------------------------------
# One-time parameter packing (f32 embedding table, bf16 weights, f32 biases)
# ----------------------------------------------------------------------------
def pack_params(params, max_length):
    emb_tab = jnp.asarray(params["embedding"], jnp.float32)   # (V, H)
    attn_w = jnp.asarray(params["attn_w"], jnp.float32)       # (2H, L)
    attn_b = jnp.asarray(params["attn_b"], jnp.float32)       # (L,)
    comb_w = jnp.asarray(params["comb_w"], jnp.float32)       # (2H, H)
    comb_b = jnp.asarray(params["comb_b"], jnp.float32)       # (H,)
    out_w = jnp.asarray(params["out_w"], jnp.float32)         # (H, V)
    out_b = jnp.asarray(params["out_b"], jnp.float32)         # (V,)

    V, H = emb_tab.shape
    L = max_length
    WH = _round_up(H, LANE)
    WL = _round_up(L, LANE)
    WV = _round_up(V, LANE)
    Vr = _round_up(V, 8)

    # Embedding table stays f32 (rows gathered in-kernel by dynamic slice) and
    # keeps width WH, independent of the vocab-padded width WV.
    emb = jnp.zeros((Vr, WH), jnp.float32).at[:V, :H].set(emb_tab)

    # Weights stored bf16 (halves resident VMEM / DMA); f32 accumulation in-kernel.
    wa = jnp.zeros((2 * WH, WL), jnp.bfloat16)
    wa = wa.at[:H, :L].set(attn_w[:H].astype(jnp.bfloat16))
    wa = wa.at[WH:WH + H, :L].set(attn_w[H:].astype(jnp.bfloat16))

    wc = jnp.zeros((2 * WH, WH), jnp.bfloat16)
    wc = wc.at[:H, :H].set(comb_w[:H].astype(jnp.bfloat16))
    wc = wc.at[WH:WH + H, :H].set(comb_w[H:].astype(jnp.bfloat16))

    # TODO(synk): for realistic vocab sizes (V >> 128) tile wo / logits over a
    # separate "parallel" V grid axis instead of widening WV (v7x 64 MiB VMEM).
    wo = jnp.zeros((WH, WV), jnp.bfloat16).at[:H, :V].set(out_w.astype(jnp.bfloat16))

    ba = jnp.zeros((1, WL), jnp.float32).at[0, :L].set(attn_b)
    bc = jnp.zeros((1, WH), jnp.float32).at[0, :H].set(comb_b)
    bo = jnp.zeros((1, WV), jnp.float32).at[0, :V].set(out_b)

    packed = dict(emb=emb, wa=wa, wc=wc, wo=wo, ba=ba, bc=bc, bo=bo)
    meta = dict(H=H, L=L, V=V, WH=WH, WL=WL, WV=WV, Vr=Vr)
    return packed, meta


# ----------------------------------------------------------------------------
# Builder: packs params once, returns a jitted fused multi-step forward
# ----------------------------------------------------------------------------
def build_attn_decoder(params, max_length, num_steps):
    packed, meta = pack_params(params, max_length)
    H, L, V = meta["H"], meta["L"], meta["V"]
    WH, WL, WV, Vr = meta["WH"], meta["WL"], meta["WV"], meta["Vr"]

    T = int(num_steps)
    T_pad = _round_up(T, TM)
    n_blocks = T_pad // TM

    kernel = functools.partial(_attn_decoder_kernel, H_pad=WH, L=L, V=V)

    def _resident(shape):
        # whole array resident in VMEM for every grid step (DMA'd once)
        return pl.BlockSpec(shape, lambda i, toks: (0, 0))

    grid_spec = pltpu.PrefetchScalarGridSpec(
        num_scalar_prefetch=1,                       # token ids -> SMEM
        grid=(n_blocks,),
        in_specs=[
            _resident((Vr, WH)),                     # embedding table (f32)
            _resident((2 * WH, WL)),                 # attn weight (bf16)
            _resident((2 * WH, WH)),                 # attn_combine weight (bf16)
            _resident((WH, WV)),                     # out weight (bf16)
            _resident((1, WL)),                      # attn bias (f32)
            _resident((1, WH)),                      # combine bias (f32)
            _resident((1, WV)),                      # out bias (f32)
            _resident((1, WH)),                      # hidden, padded (f32)
            _resident((WL, WH)),                     # encoder outputs, padded (bf16)
        ],
        out_specs=(
            pl.BlockSpec((TM, WV), lambda i, toks: (i, 0)),   # log-probs
            pl.BlockSpec((TM, WL), lambda i, toks: (i, 0)),   # attention weights
        ),
        scratch_shapes=[pltpu.VMEM((TM, WH), jnp.float32)],   # gathered embeddings
    )

    call = pl.pallas_call(
        kernel,
        out_shape=(jax.ShapeDtypeStruct((T_pad, WV), jnp.float32),
                   jax.ShapeDtypeStruct((T_pad, WL), jnp.float32)),
        grid_spec=grid_spec,
        compiler_params=pltpu.CompilerParams(
            dimension_semantics=("parallel",)),      # v7x: shard blocks over both TCs
    )

    @jax.jit
    def forward(tokens, hidden, encoder_outputs_padded):
        """Fused multi-step AttnDecoderRNN.forward.

        Mirrors T independent calls of the PyTorch forward().  NOTE: the
        reference forward() never invokes the GRU it constructs, so `hidden`
        is returned unchanged and is shared by all decode steps — this is NOT
        a real recurrent decoder.
        Returns (log_probs (T, V), hidden, attn_weights (T, L)).
        """
        toks = jnp.asarray(tokens, jnp.int32).reshape(T)
        toks_pad = jnp.zeros((T_pad,), jnp.int32).at[:T].set(toks)
        hid_pad = jnp.zeros((1, WH), jnp.float32).at[0, :H].set(
            jnp.asarray(hidden, jnp.float32).reshape(H))
        logp_pad, attw_pad = call(
            toks_pad,
            packed["emb"], packed["wa"], packed["wc"], packed["wo"],
            packed["ba"], packed["bc"], packed["bo"],
            hid_pad, encoder_outputs_padded)
        return logp_pad[:T, :V], hidden, attw_pad[:T, :L]

    def pad_encoder_outputs(encoder_outputs):
        """Hoisted once per sentence: pad encoder outputs to (WL, WH) bf16."""
        enc = jnp.zeros((WL, WH), jnp.bfloat16)
        return enc.at[:L, :H].set(
            jnp.asarray(encoder_outputs, jnp.float32).astype(jnp.bfloat16))

    return forward, pad_encoder_outputs, meta


# ----------------------------------------------------------------------------
# Pure-JAX single-step reference (eval mode), matching the PyTorch forward
# ----------------------------------------------------------------------------
def _reference_forward(token_id, hidden, encoder_outputs, params):
    H = hidden.shape[-1]
    emb = params["embedding"][token_id].reshape(1, H)
    hid = hidden.reshape(1, H)
    cat1 = jnp.concatenate([emb, hid], axis=1)
    scores = cat1 @ params["attn_w"] + params["attn_b"]
    attw = jax.nn.softmax(scores, axis=1)
    attn_applied = attw @ encoder_outputs
    cat2 = jnp.concatenate([emb, attn_applied], axis=1)
    comb = jnp.maximum(cat2 @ params["comb_w"] + params["comb_b"], 0.0)
    logits = comb @ params["out_w"] + params["out_b"]
    logp = jax.nn.log_softmax(logits, axis=1)
    return logp, hidden, attw


if __name__ == "__main__":
    # small shapes consistent with the module (hidden_size, target vocab, MAX_LENGTH)
    H = 32
    V = 64
    L = 10
    T = 10   # decode steps (== MAX_LENGTH)

    key = jax.random.PRNGKey(0)
    ks = jax.random.split(key, 9)
    params = {
        "embedding": jax.random.normal(ks[0], (V, H), jnp.float32) * 0.1,
        "attn_w":    jax.random.normal(ks[1], (2 * H, L), jnp.float32) * 0.1,
        "attn_b":    jax.random.normal(ks[2], (L,), jnp.float32) * 0.1,
        "comb_w":    jax.random.normal(ks[3], (2 * H, H), jnp.float32) * 0.1,
        "comb_b":    jax.random.normal(ks[4], (H,), jnp.float32) * 0.1,
        "out_w":     jax.random.normal(ks[5], (H, V), jnp.float32) * 0.1,
        "out_b":     jax.random.normal(ks[6], (V,), jnp.float32) * 0.1,
    }

    tokens = jax.random.randint(ks[7], (T,), 0, V, dtype=jnp.int32)
    hidden = jnp.zeros((1, 1, H), jnp.float32)                    # initHidden()
    encoder_outputs = jax.random.normal(ks[8], (L, H), jnp.float32)

    forward, pad_encoder_outputs, meta = build_attn_decoder(
        params, max_length=L, num_steps=T)
    enc_pad = pad_encoder_outputs(encoder_outputs)                # once per sentence

    logp, hidden_out, attw = forward(tokens, hidden, enc_pad)
    jax.block_until_ready((logp, hidden_out, attw))

    assert logp.shape == (T, V) and attw.shape == (T, L)

    # reference with the SAME bf16 weight/encoder rounding as the kernel
    # (f32 math) -> tight tolerance isolates kernel correctness
    def _bf16r(x):
        return jnp.asarray(x, jnp.bfloat16).astype(jnp.float32)

    params_q = dict(params)
    for k in ("attn_w", "comb_w", "out_w"):
        params_q[k] = _bf16r(params[k])
    enc_q = _bf16r(encoder_outputs)

    for t in range(T):
        r_logp, r_hid, r_attw = _reference_forward(int(tokens[t]), hidden,
                                                   enc_q, params_q)
        assert jnp.allclose(attw[t:t + 1], r_attw, rtol=1e-3, atol=1e-3)
        assert jnp.allclose(logp[t:t + 1], r_logp, rtol=1e-3, atol=1e-3)

    # sanity vs the full-f32 reference (bf16 weight storage -> looser tolerance)
    r_logp, _, r_attw = _reference_forward(int(tokens[0]), hidden,
                                           encoder_outputs, params)
    assert jnp.allclose(logp[0:1], r_logp, rtol=5e-2, atol=5e-2)
    assert jnp.allclose(attw[0:1], r_attw, rtol=5e-2, atol=5e-2)
    assert jnp.allclose(hidden_out, hidden)

    print("KERNEL_OK")
</pallas_src>

<mosaic_0001>
module attributes {stable_mosaic.version = 11 : i64} {
  func.func @_attn_decoder_kernel(%arg0: i32, %arg1: memref<16xi32, #tpu.memory_space<smem>>, %arg2: memref<64x128xf32, #tpu.memory_space<vmem>>, %arg3: memref<256x128xbf16, #tpu.memory_space<vmem>>, %arg4: memref<256x128xbf16, #tpu.memory_space<vmem>>, %arg5: memref<128x128xbf16, #tpu.memory_space<vmem>>, %arg6: memref<1x128xf32, #tpu.memory_space<vmem>>, %arg7: memref<1x128xf32, #tpu.memory_space<vmem>>, %arg8: memref<1x128xf32, #tpu.memory_space<vmem>>, %arg9: memref<1x128xf32, #tpu.memory_space<vmem>>, %arg10: memref<128x128xbf16, #tpu.memory_space<vmem>>, %arg11: memref<8x128xf32, #tpu.memory_space<vmem>>, %arg12: memref<8x128xf32, #tpu.memory_space<vmem>>, %arg13: memref<8x128xf32, #tpu.memory_space<vmem>>) attributes {dimension_semantics = [#tpu.dimension_semantics<parallel>], iteration_bounds = array<i64: 2>, scalar_prefetch = 1 : i64, scratch_operands = 1 : i64, tpu.core_type = #tpu.core_type<tc>, window_params = [{pipeline_mode = #tpu.pipeline_mode<synchronous>, transform_indices = @transform_0, window_bounds = array<i64: 64, 128>}, {pipeline_mode = #tpu.pipeline_mode<synchronous>, transform_indices = @transform_1, window_bounds = array<i64: 256, 128>}, {pipeline_mode = #tpu.pipeline_mode<synchronous>, transform_indices = @transform_2, window_bounds = array<i64: 256, 128>}, {pipeline_mode = #tpu.pipeline_mode<synchronous>, transform_indices = @transform_3, window_bounds = array<i64: 128, 128>}, {pipeline_mode = #tpu.pipeline_mode<synchronous>, transform_indices = @transform_4, window_bounds = array<i64: 1, 128>}, {pipeline_mode = #tpu.pipeline_mode<synchronous>, transform_indices = @transform_5, window_bounds = array<i64: 1, 128>}, {pipeline_mode = #tpu.pipeline_mode<synchronous>, transform_indices = @transform_6, window_bounds = array<i64: 1, 128>}, {pipeline_mode = #tpu.pipeline_mode<synchronous>, transform_indices = @transform_7, window_bounds = array<i64: 1, 128>}, {pipeline_mode = #tpu.pipeline_mode<synchronous>, transform_indices = @transform_8, window_bounds = array<i64: 128, 128>}, {transform_indices = @transform_9, window_bounds = array<i64: 8, 128>}, {transform_indices = @transform_10, window_bounds = array<i64: 8, 128>}]} {
    %c8_i32 = arith.constant 8 : i32
    %0 = arith.muli %arg0, %c8_i32 : i32
    %c0_i32 = arith.constant 0 : i32
    %1 = arith.addi %0, %c0_i32 : i32
    %2 = arith.index_cast %1 : i32 to index
    %3 = memref.load %arg1[%2] : memref<16xi32, #tpu.memory_space<smem>>
    %4 = arith.index_cast %3 : i32 to index
    %c0 = arith.constant 0 : index
    %5 = vector.load %arg2[%4, %c0] : memref<64x128xf32, #tpu.memory_space<vmem>>, vector<1x128xf32>
    %c0_0 = arith.constant 0 : index
    %c0_1 = arith.constant 0 : index
    %6 = vector.load %arg13[%c0_0, %c0_1] : memref<8x128xf32, #tpu.memory_space<vmem>>, vector<1x128xf32>
    tpu.vector_store %arg13[%c0_0, %c0_1], %5 {strides = array<i32>} : memref<8x128xf32, #tpu.memory_space<vmem>>, vector<1x128xf32>,
    %c1_i32 = arith.constant 1 : i32
    %7 = arith.addi %0, %c1_i32 : i32
    %8 = arith.index_cast %7 : i32 to index
    %9 = memref.load %arg1[%8] : memref<16xi32, #tpu.memory_space<smem>>
    %10 = arith.index_cast %9 : i32 to index
    %c0_2 = arith.constant 0 : index
    %11 = vector.load %arg2[%10, %c0_2] : memref<64x128xf32, #tpu.memory_space<vmem>>, vector<1x128xf32>
    %c1 = arith.constant 1 : index
    %c0_3 = arith.constant 0 : index
    %12 = vector.load %arg13[%c1, %c0_3] : memref<8x128xf32, #tpu.memory_space<vmem>>, vector<1x128xf32>
    tpu.vector_store %arg13[%c1, %c0_3], %11 {strides = array<i32>} : memref<8x128xf32, #tpu.memory_space<vmem>>, vector<1x128xf32>,
    %c2_i32 = arith.constant 2 : i32
    %13 = arith.addi %0, %c2_i32 : i32
    %14 = arith.index_cast %13 : i32 to index
    %15 = memref.load %arg1[%14] : memref<16xi32, #tpu.memory_space<smem>>
    %16 = arith.index_cast %15 : i32 to index
    %c0_4 = arith.constant 0 : index
    %17 = vector.load %arg2[%16, %c0_4] : memref<64x128xf32, #tpu.memory_space<vmem>>, vector<1x128xf32>
    %c2 = arith.constant 2 : index
    %c0_5 = arith.constant 0 : index
    %18 = vector.load %arg13[%c2, %c0_5] : memref<8x128xf32, #tpu.memory_space<vmem>>, vector<1x128xf32>
    tpu.vector_store %arg13[%c2, %c0_5], %17 {strides = array<i32>} : memref<8x128xf32, #tpu.memory_space<vmem>>, vector<1x128xf32>,
    %c3_i32 = arith.constant 3 : i32
    %19 = arith.addi %0, %c3_i32 : i32
    %20 = arith.index_cast %19 : i32 to index
    %21 = memref.load %arg1[%20] : memref<16xi32, #tpu.memory_space<smem>>
    %22 = arith.index_cast %21 : i32 to index
    %c0_6 = arith.constant 0 : index
    %23 = vector.load %arg2[%22, %c0_6] : memref<64x128xf32, #tpu.memory_space<vmem>>, vector<1x128xf32>
    %c3 = arith.constant 3 : index
    %c0_7 = arith.constant 0 : index
    %24 = vector.load %arg13[%c3, %c0_7] : memref<8x128xf32, #tpu.memory_space<vmem>>, vector<1x128xf32>
    tpu.vector_store %arg13[%c3, %c0_7], %23 {strides = array<i32>} : memref<8x128xf32, #tpu.memory_space<vmem>>, vector<1x128xf32>,
    %c4_i32 = arith.constant 4 : i32
    %25 = arith.addi %0, %c4_i32 : i32
    %26 = arith.index_cast %25 : i32 to index
    %27 = memref.load %arg1[%26] : memref<16xi32, #tpu.memory_space<smem>>
    %28 = arith.index_cast %27 : i32 to index
    %c0_8 = arith.constant 0 : index
    %29 = vector.load %arg2[%28, %c0_8] : memref<64x128xf32, #tpu.memory_space<vmem>>, vector<1x128xf32>
    %c4 = arith.constant 4 : index
    %c0_9 = arith.constant 0 : index
    %30 = vector.load %arg13[%c4, %c0_9] : memref<8x128xf32, #tpu.memory_space<vmem>>, vector<1x128xf32>
    tpu.vector_store %arg13[%c4, %c0_9], %29 {strides = array<i32>} : memref<8x128xf32, #tpu.memory_space<vmem>>, vector<1x128xf32>,
    %c5_i32 = arith.constant 5 : i32
    %31 = arith.addi %0, %c5_i32 : i32
    %32 = arith.index_cast %31 : i32 to index
    %33 = memref.load %arg1[%32] : memref<16xi32, #tpu.memory_space<smem>>
    %34 = arith.index_cast %33 : i32 to index
    %c0_10 = arith.constant 0 : index
    %35 = vector.load %arg2[%34, %c0_10] : memref<64x128xf32, #tpu.memory_space<vmem>>, vector<1x128xf32>
    %c5 = arith.constant 5 : index
    %c0_11 = arith.constant 0 : index
    %36 = vector.load %arg13[%c5, %c0_11] : memref<8x128xf32, #tpu.memory_space<vmem>>, vector<1x128xf32>
    tpu.vector_store %arg13[%c5, %c0_11], %35 {strides = array<i32>} : memref<8x128xf32, #tpu.memory_space<vmem>>, vector<1x128xf32>,
    %c6_i32 = arith.constant 6 : i32
    %37 = arith.addi %0, %c6_i32 : i32
    %38 = arith.index_cast %37 : i32 to index
    %39 = memref.load %arg1[%38] : memref<16xi32, #tpu.memory_space<smem>>
    %40 = arith.index_cast %39 : i32 to index
    %c0_12 = arith.constant 0 : index
    %41 = vector.load %arg2[%40, %c0_12] : memref<64x128xf32, #tpu.memory_space<vmem>>, vector<1x128xf32>
    %c6 = arith.constant 6 : index
    %c0_13 = arith.constant 0 : index
    %42 = vector.load %arg13[%c6, %c0_13] : memref<8x128xf32, #tpu.memory_space<vmem>>, vector<1x128xf32>
    tpu.vector_store %arg13[%c6, %c0_13], %41 {strides = array<i32>} : memref<8x128xf32, #tpu.memory_space<vmem>>, vector<1x128xf32>,
    %c7_i32 = arith.constant 7 : i32
    %43 = arith.addi %0, %c7_i32 : i32
    %44 = arith.index_cast %43 : i32 to index
    %45 = memref.load %arg1[%44] : memref<16xi32, #tpu.memory_space<smem>>
    %46 = arith.index_cast %45 : i32 to index
    %c0_14 = arith.constant 0 : index
    %47 = vector.load %arg2[%46, %c0_14] : memref<64x128xf32, #tpu.memory_space<vmem>>, vector<1x128xf32>
    %c7 = arith.constant 7 : index
    %c0_15 = arith.constant 0 : index
    %48 = vector.load %arg13[%c7, %c0_15] : memref<8x128xf32, #tpu.memory_space<vmem>>, vector<1x128xf32>
    tpu.vector_store %arg13[%c7, %c0_15], %47 {strides = array<i32>} : memref<8x128xf32, #tpu.memory_space<vmem>>, vector<1x128xf32>,
    %c0_16 = arith.constant 0 : index
    %c0_17 = arith.constant 0 : index
    %49 = vector.load %arg13[%c0_16, %c0_17] : memref<8x128xf32, #tpu.memory_space<vmem>>, vector<8x128xf32>
    %c0_18 = arith.constant 0 : index
    %c0_19 = arith.constant 0 : index
    %50 = vector.load %arg9[%c0_18, %c0_19] : memref<1x128xf32, #tpu.memory_space<vmem>>, vector<1x128xf32>
    %c0_20 = arith.constant 0 : index
    %c0_21 = arith.constant 0 : index
    %51 = vector.load %arg3[%c0_20, %c0_21] : memref<256x128xbf16, #tpu.memory_space<vmem>>, vector<128x128xbf16>
    %52 = arith.extf %51 : vector<128x128xbf16> to vector<128x128xf32>
    %c128 = arith.constant 128 : index
    %c0_22 = arith.constant 0 : index
    %53 = vector.load %arg3[%c128, %c0_22] : memref<256x128xbf16, #tpu.memory_space<vmem>>, vector<128x128xbf16>
    %54 = arith.extf %53 : vector<128x128xbf16> to vector<128x128xf32>
    %cst = arith.constant dense<0.000000e+00> : vector<8x128xf32>
    %55 = tpu.matmul %49, %52, %cst {dimension_numbers = #tpu.dot_dimension_numbers<[1], [0], [0], [1], [0, 0, 1, 1], [], []>} : vector<8x128xf32>, vector<128x128xf32>, vector<8x128xf32> -> vector<8x128xf32>
    %cst_23 = arith.constant dense<0.000000e+00> : vector<1x128xf32>
    %56 = tpu.matmul %50, %54, %cst_23 {dimension_numbers = #tpu.dot_dimension_numbers<[1], [0], [0], [1], [0, 0, 1, 1], [], []>} : vector<1x128xf32>, vector<128x128xf32>, vector<1x128xf32> -> vector<1x128xf32>
    %57 = vector.broadcast %56 : vector<1x128xf32> to vector<8x128xf32>
    %58 = arith.addf %55, %57 : vector<8x128xf32>
    %c0_24 = arith.constant 0 : index
    %c0_25 = arith.constant 0 : index
    %59 = vector.load %arg6[%c0_24, %c0_25] : memref<1x128xf32, #tpu.memory_space<vmem>>, vector<1x128xf32>
    %60 = vector.broadcast %59 : vector<1x128xf32> to vector<8x128xf32>
    %61 = arith.addf %58, %60 : vector<8x128xf32>
    %62 = tpu.iota {dimensions = array<i32: 1>} : vector<8x128xi32>
    %c10_i32 = arith.constant 10 : i32
    %63 = vector.broadcast %c10_i32 : i32 to vector<8x128xi32>
    %64 = arith.cmpi slt, %62, %63 : vector<8x128xi32>
    %cst_26 = arith.constant -1.000000e+30 : f32
    %65 = vector.broadcast %cst_26 : f32 to vector<8x128xf32>
    %66 = arith.select %64, %61, %65 : vector<8x128xi1>, vector<8x128xf32>
    %cst_27 = arith.constant dense<0xFF800000> : vector<8xf32>
    %67 = vector.multi_reduction <maximumf>, %66, %cst_27 [1] : vector<8x128xf32> to vector<8xf32>
    %68 = vector.shape_cast %67 : vector<8xf32> to vector<8x1xf32>
    %69 = vector.broadcast %68 : vector<8x1xf32> to vector<8x128xf32>
    %70 = arith.subf %66, %69 : vector<8x128xf32>
    %71 = math.exp %70 : vector<8x128xf32>
    %cst_28 = arith.constant dense<0.000000e+00> : vector<8xf32>
    %72 = vector.multi_reduction <add>, %71, %cst_28 [1] : vector<8x128xf32> to vector<8xf32>
    %73 = vector.shape_cast %72 : vector<8xf32> to vector<8x1xf32>
    %74 = vector.broadcast %73 : vector<8x1xf32> to vector<8x128xf32>
    %75 = arith.divf %71, %74 : vector<8x128xf32>
    %c0_29 = arith.constant 0 : index
    %c0_30 = arith.constant 0 : index
    %76 = vector.load %arg12[%c0_29, %c0_30] : memref<8x128xf32, #tpu.memory_space<vmem>>, vector<8x128xf32>
    tpu.vector_store %arg12[%c0_29, %c0_30], %75 {strides = array<i32>} : memref<8x128xf32, #tpu.memory_space<vmem>>, vector<8x128xf32>,
    %c0_31 = arith.constant 0 : index
    %c0_32 = arith.constant 0 : index
    %77 = vector.load %arg10[%c0_31, %c0_32] : memref<128x128xbf16, #tpu.memory_space<vmem>>, vector<128x128xbf16>
    %78 = arith.extf %77 : vector<128x128xbf16> to vector<128x128xf32>
    %cst_33 = arith.constant dense<0.000000e+00> : vector<8x128xf32>
    %79 = tpu.matmul %75, %78, %cst_33 {dimension_numbers = #tpu.dot_dimension_numbers<[1], [0], [0], [1], [0, 0, 1, 1], [], []>} : vector<8x128xf32>, vector<128x128xf32>, vector<8x128xf32> -> vector<8x128xf32>
    %c0_34 = arith.constant 0 : index
    %c0_35 = arith.constant 0 : index
    %80 = vector.load %arg4[%c0_34, %c0_35] : memref<256x128xbf16, #tpu.memory_space<vmem>>, vector<128x128xbf16>
    %81 = arith.extf %80 : vector<128x128xbf16> to vector<128x128xf32>
    %c128_36 = arith.constant 128 : index
    %c0_37 = arith.constant 0 : index
    %82 = vector.load %arg4[%c128_36, %c0_37] : memref<256x128xbf16, #tpu.memory_space<vmem>>, vector<128x128xbf16>
    %83 = arith.extf %82 : vector<128x128xbf16> to vector<128x128xf32>
    %cst_38 = arith.constant dense<0.000000e+00> : vector<8x128xf32>
    %84 = tpu.matmul %49, %81, %cst_38 {dimension_numbers = #tpu.dot_dimension_numbers<[1], [0], [0], [1], [0, 0, 1, 1], [], []>} : vector<8x128xf32>, vector<128x128xf32>, vector<8x128xf32> -> vector<8x128xf32>
    %cst_39 = arith.constant dense<0.000000e+00> : vector<8x128xf32>
    %85 = tpu.matmul %79, %83, %cst_39 {dimension_numbers = #tpu.dot_dimension_numbers<[1], [0], [0], [1], [0, 0, 1, 1], [], []>} : vector<8x128xf32>, vector<128x128xf32>, vector<8x128xf32> -> vector<8x128xf32>
    %86 = arith.addf %84, %85 : vector<8x128xf32>
    %c0_40 = arith.constant 0 : index
    %c0_41 = arith.constant 0 : index
    %87 = vector.load %arg7[%c0_40, %c0_41] : memref<1x128xf32, #tpu.memory_space<vmem>>, vector<1x128xf32>
    %88 = vector.broadcast %87 : vector<1x128xf32> to vector<8x128xf32>
    %89 = arith.addf %86, %88 : vector<8x128xf32>
    %cst_42 = arith.constant 0.000000e+00 : f32
    %90 = vector.broadcast %cst_42 : f32 to vector<8x128xf32>
    %91 = arith.maximumf %89, %90 : vector<8x128xf32>
    %c0_43 = arith.constant 0 : index
    %c0_44 = arith.constant 0 : index
    %92 = vector.load %arg5[%c0_43, %c0_44] : memref<128x128xbf16, #tpu.memory_space<vmem>>, vector<128x128xbf16>
    %93 = arith.extf %92 : vector<128x128xbf16> to vector<128x128xf32>
    %cst_45 = arith.constant dense<0.000000e+00> : vector<8x128xf32>
    %94 = tpu.matmul %91, %93, %cst_45 {dimension_numbers = #tpu.dot_dimension_numbers<[1], [0], [0], [1], [0, 0, 1, 1], [], []>} : vector<8x128xf32>, vector<128x128xf32>, vector<8x128xf32> -> vector<8x128xf32>
    %c0_46 = arith.constant 0 : index
    %c0_47 = arith.constant 0 : index
    %95 = vector.load %arg8[%c0_46, %c0_47] : memref<1x128xf32, #tpu.memory_space<vmem>>, vector<1x128xf32>
    %96 = vector.broadcast %95 : vector<1x128xf32> to vector<8x128xf32>
    %97 = arith.addf %94, %96 : vector<8x128xf32>
    %98 = tpu.iota {dimensions = array<i32: 1>} : vector<8x128xi32>
    %c64_i32 = arith.constant 64 : i32
    %99 = vector.broadcast %c64_i32 : i32 to vector<8x128xi32>
    %100 = arith.cmpi slt, %98, %99 : vector<8x128xi32>
    %cst_48 = arith.constant -1.000000e+30 : f32
    %101 = vector.broadcast %cst_48 : f32 to vector<8x128xf32>
    %102 = arith.select %100, %97, %101 : vector<8x128xi1>, vector<8x128xf32>
    %cst_49 = arith.constant dense<0xFF800000> : vector<8xf32>
    %103 = vector.multi_reduction <maximumf>, %102, %cst_49 [1] : vector<8x128xf32> to vector<8xf32>
    %104 = vector.shape_cast %103 : vector<8xf32> to vector<8x1xf32>
    %105 = vector.broadcast %104 : vector<8x1xf32> to vector<8x128xf32>
    %106 = arith.subf %102, %105 : vector<8x128xf32>
    %107 = math.exp %106 : vector<8x128xf32>
    %cst_50 = arith.constant dense<0.000000e+00> : vector<8xf32>
    %108 = vector.multi_reduction <add>, %107, %cst_50 [1] : vector<8x128xf32> to vector<8xf32>
    %109 = vector.shape_cast %108 : vector<8xf32> to vector<8x1xf32>
    %110 = math.log %109 : vector<8x1xf32>
    %111 = arith.addf %110, %104 : vector<8x1xf32>
    %112 = vector.broadcast %111 : vector<8x1xf32> to vector<8x128xf32>
    %113 = arith.subf %102, %112 : vector<8x128xf32>
    %c0_51 = arith.constant 0 : index
    %c0_52 = arith.constant 0 : index
    %114 = vector.load %arg11[%c0_51, %c0_52] : memref<8x128xf32, #tpu.memory_space<vmem>>, vector<8x128xf32>
    tpu.vector_store %arg11[%c0_51, %c0_52], %113 {strides = array<i32>} : memref<8x128xf32, #tpu.memory_space<vmem>>, vector<8x128xf32>,
    return
  }
  func.func @transform_0(%arg0: i32, %arg1: memref<16xi32, #tpu.memory_space<smem>>) -> (i32, i32) {
    %c0_i32 = arith.constant 0 : i32
    %c0_i32_0 = arith.constant 0 : i32
    %c0_i32_1 = arith.constant 0 : i32
    return %c0_i32, %c0_i32_0 : i32, i32
  }
  func.func @transform_1(%arg0: i32, %arg1: memref<16xi32, #tpu.memory_space<smem>>) -> (i32, i32) {
    %c0_i32 = arith.constant 0 : i32
    %c0_i32_0 = arith.constant 0 : i32
    %c0_i32_1 = arith.constant 0 : i32
    return %c0_i32, %c0_i32_0 : i32, i32
  }
  func.func @transform_2(%arg0: i32, %arg1: memref<16xi32, #tpu.memory_space<smem>>) -> (i32, i32) {
    %c0_i32 = arith.constant 0 : i32
    %c0_i32_0 = arith.constant 0 : i32
    %c0_i32_1 = arith.constant 0 : i32
    return %c0_i32, %c0_i32_0 : i32, i32
  }
  func.func @transform_3(%arg0: i32, %arg1: memref<16xi32, #tpu.memory_space<smem>>) -> (i32, i32) {
    %c0_i32 = arith.constant 0 : i32
    %c0_i32_0 = arith.constant 0 : i32
    %c0_i32_1 = arith.constant 0 : i32
    return %c0_i32, %c0_i32_0 : i32, i32
  }
  func.func @transform_4(%arg0: i32, %arg1: memref<16xi32, #tpu.memory_space<smem>>) -> (i32, i32) {
    %c0_i32 = arith.constant 0 : i32
    %c0_i32_0 = arith.constant 0 : i32
    %c0_i32_1 = arith.constant 0 : i32
    return %c0_i32, %c0_i32_0 : i32, i32
  }
  func.func @transform_5(%arg0: i32, %arg1: memref<16xi32, #tpu.memory_space<smem>>) -> (i32, i32) {
    %c0_i32 = arith.constant 0 : i32
    %c0_i32_0 = arith.constant 0 : i32
    %c0_i32_1 = arith.constant 0 : i32
    return %c0_i32, %c0_i32_0 : i32, i32
  }
  func.func @transform_6(%arg0: i32, %arg1: memref<16xi32, #tpu.memory_space<smem>>) -> (i32, i32) {
    %c0_i32 = arith.constant 0 : i32
    %c0_i32_0 = arith.constant 0 : i32
    %c0_i32_1 = arith.constant 0 : i32
    return %c0_i32, %c0_i32_0 : i32, i32
  }
  func.func @transform_7(%arg0: i32, %arg1: memref<16xi32, #tpu.memory_space<smem>>) -> (i32, i32) {
    %c0_i32 = arith.constant 0 : i32
    %c0_i32_0 = arith.constant 0 : i32
    %c0_i32_1 = arith.constant 0 : i32
    return %c0_i32, %c0_i32_0 : i32, i32
  }
  func.func @transform_8(%arg0: i32, %arg1: memref<16xi32, #tpu.memory_space<smem>>) -> (i32, i32) {
    %c0_i32 = arith.constant 0 : i32
    %c0_i32_0 = arith.constant 0 : i32
    %c0_i32_1 = arith.constant 0 : i32
    return %c0_i32, %c0_i32_0 : i32, i32
  }
  func.func @transform_9(%arg0: i32, %arg1: memref<16xi32, #tpu.memory_space<smem>>) -> (i32, i32) {
    %c0_i32 = arith.constant 0 : i32
    %c0_i32_0 = arith.constant 0 : i32
    return %arg0, %c0_i32 : i32, i32
  }
  func.func @transform_10(%arg0: i32, %arg1: memref<16xi32, #tpu.memory_space<smem>>) -> (i32, i32) {
    %c0_i32 = arith.constant 0 : i32
    %c0_i32_0 = arith.constant 0 : i32
    return %arg0, %c0_i32 : i32, i32
  }
}

</mosaic_0001>

<llo_original>
// kernel: forward.1
$region0: #{forward.1}
  #allocation0 [shape = 'u32[]', space=smem, size = 0x4, offset = 0x4, fixed_abs, tag = 'smem constant byte address 0x4 - core index']
  #allocation1 [shape = 'u32[144,128]{1,0:T(1,128)}', space=vmem, size = 0x12000, scoped, tag = 'internal scratch']
  #allocation2 [shape = 'f32[8,128]{1,0:T(8,128)}', space=vmem, size = 0x1000, scoped, tag = 'scratch operand']
  #allocation3 [shape = 's32[1]{0}', space=sflag, size = 0x4, scoped, tag = 'scoped memory for forward.1']
  #allocation4 [shape = 'u8[512]{0}', space=smem, size = 0x200, scoped, tag = 'prefetched SMEM operand 0']
  %s0 = inlined_call_operand.vmem [shape: s32[16], index: 0, kind: input, shape index: {}]
  %s1 = inlined_call_operand.hbm [shape: f32[64,128], index: 1, kind: input, shape index: {}]
  %s2 = inlined_call_operand.hbm [shape: bf16[256,128], index: 2, kind: input, shape index: {}]
  %s3 = inlined_call_operand.hbm [shape: bf16[256,128], index: 3, kind: input, shape index: {}]
  %s4 = inlined_call_operand.hbm [shape: bf16[128,128], index: 4, kind: input, shape index: {}]
  %s5 = inlined_call_operand.vmem [shape: f32[1,128], index: 5, kind: input, shape index: {}]
  %s6 = inlined_call_operand.vmem [shape: f32[1,128], index: 6, kind: input, shape index: {}]
  %s7 = inlined_call_operand.vmem [shape: f32[1,128], index: 7, kind: input, shape index: {}]
  %s8 = inlined_call_operand.vmem [shape: f32[1,128], index: 8, kind: input, shape index: {}]
  %s9 = inlined_call_operand.hbm [shape: bf16[128,128], index: 9, kind: input, shape index: {}]
  %s10 = inlined_call_operand.hbm [shape: f32[16,128], index: 10, kind: output, shape index: {0}]
  %s11 = inlined_call_operand.hbm [shape: f32[16,128], index: 11, kind: output, shape index: {1}]
  %12 = xla_tuple %s10, %s11
  %s13 = sld [smem:[#allocation0]]
  $region97: #{forward.1} parent=0
    _
  %s15 = ssub.s32 1, %s13
  %s16 = scalar_select 0, %s15, %s13
  %s17 = sshll.u32 %s0, 4
  %s18 = int_to_ptr.vmem [resolvable:$true] %s17
  %20 = dma.vmem_to_smem %s18, 16, [#allocation4], [#allocation3]
  %21 = dma.done [#allocation3], 16
  %22 = sfence
  $region1: #{forward.1} parent=0
    #allocation5 [shape = 'u8[32768]{0}', space=vmem, size = 0x8000, scoped, tag = 'input window, operand 1, single buffered']
    #allocation6 [shape = 's32[2]{0}', space=sflag, size = 0x8, scoped, tag = 'scoped memory for forward.1']
    #allocation7 [shape = 's32[2]{0}', space=sflag, size = 0x8, scoped, tag = 'scoped memory for forward.1']
    #allocation8 [shape = 'u8[65536]{0}', space=vmem, size = 0x10000, scoped, tag = 'input window, operand 2, single buffered']
    #allocation9 [shape = 's32[1]{0}', space=sflag, size = 0x4, scoped, tag = 'scoped memory for forward.1']
    #allocation10 [shape = 'u8[65536]{0}', space=vmem, size = 0x10000, scoped, tag = 'input window, operand 3, single buffered']
    #allocation11 [shape = 'u8[32768]{0}', space=vmem, size = 0x8000, scoped, tag = 'input window, operand 4, single buffered']
    #allocation12 [shape = 's32[1]{0}', space=sflag, size = 0x4, scoped, tag = 'scoped memory for forward.1']
    #allocation13 [shape = 'u8[32768]{0}', space=vmem, size = 0x8000, scoped, tag = 'input window, operand 9, single buffered']
    #allocation14 [shape = 'u8[8192]{0}', space=vmem, size = 0x2000, scoped, tag = 'output window, operand 0']
    #allocation15 [shape = 'u8[8192]{0}', space=vmem, size = 0x2000, scoped, tag = 'output window, operand 1']
    #allocation16 [shape = 's32[2]{0}', space=sflag, size = 0x8, scoped, tag = 'scoped memory for forward.1']
    %23 = vsyncpa [#allocation6], 0
    %24 = vsyncpa [#allocation9], 0
    %25 = vsyncpa [#allocation12], 0
    %26 = vsyncpa [#allocation7], 0
    %s27 = scalar_lea.sflag [#allocation7], 1
    %28 = vsyncpa %s27, 0
    %29 = vsyncpa [#allocation16], 0
    %s30 = scalar_lea.sflag [#allocation16], 1
    %31 = vsyncpa %s30, 0
    loop: start=0, step=1, limit=4
    $region2: #{forward.1} parent=1 // loop_pre_header
      _
    $region3: #{forward.1} parent=1 // loop_header
      %s33 = sphi 0, %s37
      %p34 = scmp.ge.s32.totalorder %s33, 4
      %s41 = sphi 0, %s41
      %s43 = sphi 0, %s41
      %s44 = sphi 0, %s43
      %s58 = sphi 0, %s44
      %s62 = sphi 0, %s62
      %s64 = sphi 0, %s62
      %s65 = sphi 0, %s64
      %s79 = sphi 0, %s65
      %s83 = sphi 0, %s83
      %s85 = sphi 0, %s83
      %s86 = sphi 0, %s85
      %s100 = sphi 0, %s86
      %s104 = sphi 0, %s104
      %s106 = sphi 0, %s104
      %s107 = sphi 0, %s106
      %s121 = sphi 0, %s107
      %s125 = sphi 0, %s125
      %s127 = sphi 0, %s125
      %s128 = sphi 0, %s127
      %s142 = sphi 0, %s128
      %s146 = sphi 0, %s146
      %s148 = sphi 0, %s146
      %s149 = sphi 0, %s148
      %s163 = sphi 0, %s149
      %s167 = sphi 0, %s167
      %s169 = sphi 0, %s167
      %s170 = sphi 0, %s169
      %s184 = sphi 0, %s170
      %s188 = sphi 0, %s188
      %s190 = sphi 0, %s188
      %s191 = sphi 0, %s190
      %s205 = sphi 0, %s191
      %s209 = sphi 0, %s209
      %s211 = sphi 0, %s209
      %s212 = sphi 0, %s211
      %s226 = sphi 0, %s212
      %s232 = sphi 0, %s234
      %s235 = sphi 0, %s232
      %s236 = sphi 0, %s235
      %s252 = sphi 0, %s236
      %s258 = sphi 0, %s260
      %s261 = sphi 0, %s258
      %s262 = sphi 0, %s261
      %s278 = sphi 0, %s262
    $region4: #{forward.1} parent=1 // loop_header_branch
      %36 = sbr.rel (%p34) target = $region8
    $region5: #{forward.1} parent=1 // loop_body
      %s38 = ssub.s32 %s33, 1
      %s39 = ssub.s32 %s33, 2
      %s40 = sadd.s32 %s33, 1
      %s42 = sadd.s32 %s41, 1
      %p45 = scmp.eq.s32.totalorder %s33, 1
      %p46 = scmp.ne.s32.totalorder %s41, %s43
      %p47 = scmp.eq.s32.totalorder %s33, 0
      %p48 = por %p46, %p47
      %p49 = scmp.ne.s32.totalorder %s41, %s43
      %p50 = scmp.eq.s32.totalorder %s38, 1
      %p51 = por %p49, %p50
      %p52 = scmp.ne.s32.totalorder %s43, %s44
      %p53 = scmp.eq.s32.totalorder %s38, 0
      %p54 = por %p52, %p53
      %p55 = scmp.ne.s32.totalorder %s43, %s44
      %p56 = scmp.eq.s32.totalorder %s39, 1
      %p57 = por %p55, %p56
      %p59 = scmp.ne.s32.totalorder %s44, %s58
      %p60 = scmp.eq.s32.totalorder %s39, 0
      %p61 = por %p59, %p60
      %s63 = sadd.s32 %s62, 1
      %p66 = scmp.eq.s32.totalorder %s33, 1
      %p67 = scmp.ne.s32.totalorder %s62, %s64
      %p68 = scmp.eq.s32.totalorder %s33, 0
      %p69 = por %p67, %p68
      %p70 = scmp.ne.s32.totalorder %s62, %s64
      %p71 = scmp.eq.s32.totalorder %s38, 1
      %p72 = por %p70, %p71
      %p73 = scmp.ne.s32.totalorder %s64, %s65
      %p74 = scmp.eq.s32.totalorder %s38, 0
      %p75 = por %p73, %p74
      %p76 = scmp.ne.s32.totalorder %s64, %s65
      %p77 = scmp.eq.s32.totalorder %s39, 1
      %p78 = por %p76, %p77
      %p80 = scmp.ne.s32.totalorder %s65, %s79
      %p81 = scmp.eq.s32.totalorder %s39, 0
      %p82 = por %p80, %p81
      %s84 = sadd.s32 %s83, 1
      %p87 = scmp.eq.s32.totalorder %s33, 1
      %p88 = scmp.ne.s32.totalorder %s83, %s85
      %p89 = scmp.eq.s32.totalorder %s33, 0
      %p90 = por %p88, %p89
      %p91 = scmp.ne.s32.totalorder %s83, %s85
      %p92 = scmp.eq.s32.totalorder %s38, 1
      %p93 = por %p91, %p92
      %p94 = scmp.ne.s32.totalorder %s85, %s86
      %p95 = scmp.eq.s32.totalorder %s38, 0
      %p96 = por %p94, %p95
      %p97 = scmp.ne.s32.totalorder %s85, %s86
      %p98 = scmp.eq.s32.totalorder %s39, 1
      %p99 = por %p97, %p98
      %p101 = scmp.ne.s32.totalorder %s86, %s100
      %p102 = scmp.eq.s32.totalorder %s39, 0
      %p103 = por %p101, %p102
      %s105 = sadd.s32 %s104, 1
      %p108 = scmp.eq.s32.totalorder %s33, 1
      %p109 = scmp.ne.s32.totalorder %s104, %s106
      %p110 = scmp.eq.s32.totalorder %s33, 0
      %p111 = por %p109, %p110
      %p112 = scmp.ne.s32.totalorder %s104, %s106
      %p113 = scmp.eq.s32.totalorder %s38, 1
      %p114 = por %p112, %p113
      %p115 = scmp.ne.s32.totalorder %s106, %s107
      %p116 = scmp.eq.s32.totalorder %s38, 0
      %p117 = por %p115, %p116
      %p118 = scmp.ne.s32.totalorder %s106, %s107
      %p119 = scmp.eq.s32.totalorder %s39, 1
      %p120 = por %p118, %p119
      %p122 = scmp.ne.s32.totalorder %s107, %s121
      %p123 = scmp.eq.s32.totalorder %s39, 0
      %p124 = por %p122, %p123
      %s126 = sadd.s32 %s125, 1
      %p129 = scmp.eq.s32.totalorder %s33, 1
      %p130 = scmp.ne.s32.totalorder %s125, %s127
      %p131 = scmp.eq.s32.totalorder %s33, 0
      %p132 = por %p130, %p131
      %p133 = scmp.ne.s32.totalorder %s125, %s127
      %p134 = scmp.eq.s32.totalorder %s38, 1
      %p135 = por %p133, %p134
      %p136 = scmp.ne.s32.totalorder %s127, %s128
      %p137 = scmp.eq.s32.totalorder %s38, 0
      %p138 = por %p136, %p137
      %p139 = scmp.ne.s32.totalorder %s127, %s128
      %p140 = scmp.eq.s32.totalorder %s39, 1
      %p141 = por %p139, %p140
      %p143 = scmp.ne.s32.totalorder %s128, %s142
      %p144 = scmp.eq.s32.totalorder %s39, 0
      %p145 = por %p143, %p144
      %s147 = sadd.s32 %s146, 1
      %p150 = scmp.eq.s32.totalorder %s33, 1
      %p151 = scmp.ne.s32.totalorder %s146, %s148
      %p152 = scmp.eq.s32.totalorder %s33, 0
      %p153 = por %p151, %p152
      %p154 = scmp.ne.s32.totalorder %s146, %s148
      %p155 = scmp.eq.s32.totalorder %s38, 1
      %p156 = por %p154, %p155
      %p157 = scmp.ne.s32.totalorder %s148, %s149
      %p158 = scmp.eq.s32.totalorder %s38, 0
      %p159 = por %p157, %p158
      %p160 = scmp.ne.s32.totalorder %s148, %s149
      %p161 = scmp.eq.s32.totalorder %s39, 1
      %p162 = por %p160, %p161
      %p164 = scmp.ne.s32.totalorder %s149, %s163
      %p165 = scmp.eq.s32.totalorder %s39, 0
      %p166 = por %p164, %p165
      %s168 = sadd.s32 %s167, 1
      %p171 = scmp.eq.s32.totalorder %s33, 1
      %p172 = scmp.ne.s32.totalorder %s167, %s169
      %p173 = scmp.eq.s32.totalorder %s33, 0
      %p174 = por %p172, %p173
      %p175 = scmp.ne.s32.totalorder %s167, %s169
      %p176 = scmp.eq.s32.totalorder %s38, 1
      %p177 = por %p175, %p176
      %p178 = scmp.ne.s32.totalorder %s169, %s170
      %p179 = scmp.eq.s32.totalorder %s38, 0
      %p180 = por %p178, %p179
      %p181 = scmp.ne.s32.totalorder %s169, %s170
      %p182 = scmp.eq.s32.totalorder %s39, 1
      %p183 = por %p181, %p182
      %p185 = scmp.ne.s32.totalorder %s170, %s184
      %p186 = scmp.eq.s32.totalorder %s39, 0
      %p187 = por %p185, %p186
      %s189 = sadd.s32 %s188, 1
      %p192 = scmp.eq.s32.totalorder %s33, 1
      %p193 = scmp.ne.s32.totalorder %s188, %s190
      %p194 = scmp.eq.s32.totalorder %s33, 0
      %p195 = por %p193, %p194
      %p196 = scmp.ne.s32.totalorder %s188, %s190
      %p197 = scmp.eq.s32.totalorder %s38, 1
      %p198 = por %p196, %p197
      %p199 = scmp.ne.s32.totalorder %s190, %s191
      %p200 = scmp.eq.s32.totalorder %s38, 0
      %p201 = por %p199, %p200
      %p202 = scmp.ne.s32.totalorder %s190, %s191
      %p203 = scmp.eq.s32.totalorder %s39, 1
      %p204 = por %p202, %p203
      %p206 = scmp.ne.s32.totalorder %s191, %s205
      %p207 = scmp.eq.s32.totalorder %s39, 0
      %p208 = por %p206, %p207
      %s210 = sadd.s32 %s209, 1
      %p213 = scmp.eq.s32.totalorder %s33, 1
      %p214 = scmp.ne.s32.totalorder %s209, %s211
      %p215 = scmp.eq.s32.totalorder %s33, 0
      %p216 = por %p214, %p215
      %p217 = scmp.ne.s32.totalorder %s209, %s211
      %p218 = scmp.eq.s32.totalorder %s38, 1
      %p219 = por %p217, %p218
      %p220 = scmp.ne.s32.totalorder %s211, %s212
      %p221 = scmp.eq.s32.totalorder %s38, 0
      %p222 = por %p220, %p221
      %p223 = scmp.ne.s32.totalorder %s211, %s212
      %p224 = scmp.eq.s32.totalorder %s39, 1
      %p225 = por %p223, %p224
      %p227 = scmp.ne.s32.totalorder %s212, %s226
      %p228 = scmp.eq.s32.totalorder %s39, 0
      %p229 = por %p227, %p228
      %s230 = ssub.s32 %s33, %s40
      %p231 = scmp.eq.s32.totalorder %s230, 0
      %s233 = sadd.s32 %s232, 1
      %s234 = scalar_select %p231, %s232, %s233
      %p237 = pneg %p231
      %p238 = scmp.eq.s32.totalorder %s33, 1
      %p239 = por %p237, %p238
      %p240 = scmp.ne.s32.totalorder %s232, %s235
      %p241 = scmp.eq.s32.totalorder %s33, 0
      %p242 = por %p240, %p241
      %p243 = scmp.ne.s32.totalorder %s232, %s235
      %p244 = scmp.eq.s32.totalorder %s38, 1
      %p245 = por %p243, %p244
      %p246 = scmp.ne.s32.totalorder %s235, %s236
      %p247 = scmp.eq.s32.totalorder %s38, 0
      %p248 = por %p246, %p247
      %p249 = scmp.ne.s32.totalorder %s235, %s236
      %p250 = scmp.eq.s32.totalorder %s39, 1
      %p251 = por %p249, %p250
      %p253 = scmp.ne.s32.totalorder %s236, %s252
      %p254 = scmp.eq.s32.totalorder %s39, 0
      %p255 = por %p253, %p254
      %s256 = ssub.s32 %s33, %s40
      %p257 = scmp.eq.s32.totalorder %s256, 0
      %s259 = sadd.s32 %s258, 1
      %s260 = scalar_select %p257, %s258, %s259
      %p263 = pneg %p257
      %p264 = scmp.eq.s32.totalorder %s33, 1
      %p265 = por %p263, %p264
      %p266 = scmp.ne.s32.totalorder %s258, %s261
      %p267 = scmp.eq.s32.totalorder %s33, 0
      %p268 = por %p266, %p267
      %p269 = scmp.ne.s32.totalorder %s258, %s261
      %p270 = scmp.eq.s32.totalorder %s38, 1
      %p271 = por %p269, %p270
      %p272 = scmp.ne.s32.totalorder %s261, %s262
      %p273 = scmp.eq.s32.totalorder %s38, 0
      %p274 = por %p272, %p273
      %p275 = scmp.ne.s32.totalorder %s261, %s262
      %p276 = scmp.eq.s32.totalorder %s39, 1
      %p277 = por %p275, %p276
      %p279 = scmp.ne.s32.totalorder %s262, %s278
      %p280 = scmp.eq.s32.totalorder %s39, 0
      %p281 = por %p279, %p280
      %p282 = scmp.le.s32.totalorder 1, %s33
      %p283 = scmp.lt.s32.totalorder %s33, 3
      %p284 = pnand %p282, %p283
      %p285 = pneg %p284
      // Predicated region
      $region9: #{forward.1} parent=5 // pred_check
        _
      $region10: #{forward.1} parent=5 // pred_check_branch
        %287 = sbr.rel (%p284) target = $region12
      $region11: #{forward.1} parent=5 // pred_region
        %s288 = ssub.s32 %s33, 1
        // Predicated region
        $region13: #{forward.1} parent=11 // pred_check
          %p289 = pneg %p54
        $region14: #{forward.1} parent=11 // pred_check_branch
          %291 = sbr.rel (%p289) target = $region16
        $region15: #{forward.1} parent=11 // pred_region
          %s293 = ssub.s32 1024, 1024
          %294 = vsyncadd [#allocation6], %s293
          %s295 = sshll.u32 [#allocation5], 4
          %s296 = int_to_ptr.vmem [resolvable:$true] %s295
          %301 = dma.hbm_to_vmem [thread:$0]  %s1, 1024, %s296, [#allocation6], 128, 128, 8
        $region16: #{forward.1} parent=11 // pred_fallthru
          _
        // Predicated region
        $region17: #{forward.1} parent=11 // pred_check
          %p302 = pneg %p75
        $region18: #{forward.1} parent=11 // pred_check_branch
          %304 = sbr.rel (%p302) target = $region20
        $region19: #{forward.1} parent=11 // pred_region
          %s306 = ssub.s32 2048, 2048
          %307 = vsyncadd [#allocation9], %s306
          %s308 = sshll.u32 [#allocation8], 4
          %s309 = int_to_ptr.vmem [resolvable:$true] %s308
          %314 = dma.hbm_to_vmem [thread:$0]  %s2, 2048, %s309, [#allocation9], 64, 64, 4
        $region20: #{forward.1} parent=11 // pred_fallthru
          _
        // Predicated region
        $region21: #{forward.1} parent=11 // pred_check
          %p315 = pneg %p96
        $region22: #{forward.1} parent=11 // pred_check_branch
          %317 = sbr.rel (%p315) target = $region24
        $region23: #{forward.1} parent=11 // pred_region
          %s319 = ssub.s32 2048, 2048
          %320 = vsyncadd [#allocation9], %s319
          %s321 = sshll.u32 [#allocation10], 4
          %s322 = int_to_ptr.vmem [resolvable:$true] %s321
          %327 = dma.hbm_to_vmem [thread:$0]  %s3, 2048, %s322, [#allocation9], 64, 64, 4
        $region24: #{forward.1} parent=11 // pred_fallthru
          _
        // Predicated region
        $region25: #{forward.1} parent=11 // pred_check
          %p328 = pneg %p117
        $region26: #{forward.1} parent=11 // pred_check_branch
          %330 = sbr.rel (%p328) target = $region28
        $region27: #{forward.1} parent=11 // pred_region
          %s332 = ssub.s32 1024, 1024
          %333 = vsyncadd [#allocation12], %s332
          %s334 = sshll.u32 [#allocation11], 4
          %s335 = int_to_ptr.vmem [resolvable:$true] %s334
          %340 = dma.hbm_to_vmem [thread:$0]  %s4, 1024, %s335, [#allocation12], 64, 64, 4
        $region28: #{forward.1} parent=11 // pred_fallthru
          _
        // Predicated region
        $region29: #{forward.1} parent=11 // pred_check
          %p341 = pneg %p138
        $region30: #{forward.1} parent=11 // pred_check_branch
          %343 = sbr.rel (%p341) target = $region32
        $region31: #{forward.1} parent=11 // pred_region
          _
        $region32: #{forward.1} parent=11 // pred_fallthru
          _
        // Predicated region
        $region33: #{forward.1} parent=11 // pred_check
          %p344 = pneg %p159
        $region34: #{forward.1} parent=11 // pred_check_branch
          %346 = sbr.rel (%p344) target = $region36
        $region35: #{forward.1} parent=11 // pred_region
          _
        $region36: #{forward.1} parent=11 // pred_fallthru
          _
        // Predicated region
        $region37: #{forward.1} parent=11 // pred_check
          %p347 = pneg %p180
        $region38: #{forward.1} parent=11 // pred_check_branch
          %349 = sbr.rel (%p347) target = $region40
        $region39: #{forward.1} parent=11 // pred_region
          _
        $region40: #{forward.1} parent=11 // pred_fallthru
          _
        // Predicated region
        $region41: #{forward.1} parent=11 // pred_check
          %p350 = pneg %p201
        $region42: #{forward.1} parent=11 // pred_check_branch
          %352 = sbr.rel (%p350) target = $region44
        $region43: #{forward.1} parent=11 // pred_region
          _
        $region44: #{forward.1} parent=11 // pred_fallthru
          _
        // Predicated region
        $region45: #{forward.1} parent=11 // pred_check
          %p353 = pneg %p222
        $region46: #{forward.1} parent=11 // pred_check_branch
          %355 = sbr.rel (%p353) target = $region48
        $region47: #{forward.1} parent=11 // pred_region
          %s357 = ssub.s32 1024, 1024
          %358 = vsyncadd [#allocation12], %s357
          %s359 = sshll.u32 [#allocation13], 4
          %s360 = int_to_ptr.vmem [resolvable:$true] %s359
          %365 = dma.hbm_to_vmem [thread:$0]  %s9, 1024, %s360, [#allocation12], 64, 64, 4
        $region48: #{forward.1} parent=11 // pred_fallthru
          _
      $region12: #{forward.1} parent=5 // pred_fallthru
        _
      %p366 = scmp.lt.s32.totalorder %s33, 2
      // Predicated region
      $region49: #{forward.1} parent=5 // pred_check
        %p367 = pneg %p366
      $region50: #{forward.1} parent=5 // pred_check_branch
        %369 = sbr.rel (%p367) target = $region52
      $region51: #{forward.1} parent=5 // pred_region
        _
      $region52: #{forward.1} parent=5 // pred_fallthru
        _
      %p370 = scmp.le.s32.totalorder 1, %s33
      %p371 = scmp.lt.s32.totalorder %s33, 3
      %p372 = pnand %p370, %p371
      %p373 = pneg %p372
      // Predicated region
      $region53: #{forward.1} parent=5 // pred_check
        _
      $region54: #{forward.1} parent=5 // pred_check_branch
        %375 = sbr.rel (%p372) target = $region56
      $region55: #{forward.1} parent=5 // pred_region
        %s376 = ssub.s32 %s33, 1
        // Predicated region
        $region57: #{forward.1} parent=55 // pred_check
          %p377 = pneg %p54
        $region58: #{forward.1} parent=55 // pred_check_branch
          %379 = sbr.rel (%p377) target = $region60
        $region59: #{forward.1} parent=55 // pred_region
          %380 = dma.done [#allocation6], 1024
        $region60: #{forward.1} parent=55 // pred_fallthru
          _
        // Predicated region
        $region61: #{forward.1} parent=55 // pred_check
          %p381 = pneg %p75
        $region62: #{forward.1} parent=55 // pred_check_branch
          %383 = sbr.rel (%p381) target = $region64
        $region63: #{forward.1} parent=55 // pred_region
          %384 = dma.done [#allocation9], 2048
        $region64: #{forward.1} parent=55 // pred_fallthru
          _
        // Predicated region
        $region65: #{forward.1} parent=55 // pred_check
          %p385 = pneg %p96
        $region66: #{forward.1} parent=55 // pred_check_branch
          %387 = sbr.rel (%p385) target = $region68
        $region67: #{forward.1} parent=55 // pred_region
          %388 = dma.done [#allocation9], 2048
        $region68: #{forward.1} parent=55 // pred_fallthru
          _
        // Predicated region
        $region69: #{forward.1} parent=55 // pred_check
          %p389 = pneg %p117
        $region70: #{forward.1} parent=55 // pred_check_branch
          %391 = sbr.rel (%p389) target = $region72
        $region71: #{forward.1} parent=55 // pred_region
          %392 = dma.done [#allocation12], 1024
        $region72: #{forward.1} parent=55 // pred_fallthru
          _
        // Predicated region
        $region73: #{forward.1} parent=55 // pred_check
          %p393 = pneg %p222
        $region74: #{forward.1} parent=55 // pred_check_branch
          %395 = sbr.rel (%p393) target = $region76
        $region75: #{forward.1} parent=55 // pred_region
          %396 = dma.done [#allocation12], 1024
        $region76: #{forward.1} parent=55 // pred_fallthru
          _
        %p397 = pneg %p54
        %p398 = pneg %p51
        %p399 = pneg %p75
        %p400 = pneg %p72
        %p401 = pneg %p96
        %p402 = pneg %p93
        %p403 = pneg %p117
        %p404 = pneg %p114
        %p405 = pneg %p138
        %p406 = pneg %p135
        %p407 = pneg %p159
        %p408 = pneg %p156
        %p409 = pneg %p180
        %p410 = pneg %p177
        %p411 = pneg %p201
        %p412 = pneg %p198
        %p413 = pneg %p222
        %p414 = pneg %p219
        %p415 = pneg %p248
        %p416 = pneg %p245
        %s417 = sand.u32 %s235, 1
        %s418 = scalar_lea.sflag [#allocation7], %s417
        %s419 = sand.u32 %s235, 1
        %s420 = smul.addr %s419, 8
        %s421 = scalar_lea.vmem [#allocation14], %s420
        %p422 = pneg %p274
        %p423 = pneg %p271
        %s424 = sand.u32 %s261, 1
        %s425 = scalar_lea.sflag [#allocation16], %s424
        %s426 = sand.u32 %s261, 1
        %s427 = smul.addr %s426, 8
        %s428 = scalar_lea.vmem [#allocation15], %s427
        %s429 = smul.u32 %s38, 8
        %s430 = sld [smem:[#allocation4 + %s429]]
        %s431 = scalar_lea.vmem [#allocation5], %s430
        %v432 = vld [vmem:[%s431] sm:$0x1]
        %433 = vst [vmem:[#allocation2] sm:$0x1] %v432
        %s434 = sadd.s32 %s429, 1
        %s435 = sld [smem:[#allocation4 + %s434]]
        %s436 = scalar_lea.vmem [#allocation5], %s435
        %v437 = vld [vmem:[%s436] sm:$0x1]
        %438 = vst [vmem:[#allocation2 + $0x1] sm:$0x1] %v437
        %s439 = sadd.s32 %s429, 2
        %s440 = sld [smem:[#allocation4 + %s439]]
        %s441 = scalar_lea.vmem [#allocation5], %s440
        %v442 = vld [vmem:[%s441] sm:$0x1]
        %443 = vst [vmem:[#allocation2 + $0x2] sm:$0x1] %v442
        %s444 = sadd.s32 %s429, 3
        %s445 = sld [smem:[#allocation4 + %s444]]
        %s446 = scalar_lea.vmem [#allocation5], %s445
        %v447 = vld [vmem:[%s446] sm:$0x1]
        %448 = vst [vmem:[#allocation2 + $0x3] sm:$0x1] %v447
        %s449 = sadd.s32 %s429, 4
        %s450 = sld [smem:[#allocation4 + %s449]]
        %s451 = scalar_lea.vmem [#allocation5], %s450
        %v452 = vld [vmem:[%s451] sm:$0x1]
        %453 = vst [vmem:[#allocation2 + $0x4] sm:$0x1] %v452
        %s454 = sadd.s32 %s429, 5
        %s455 = sld [smem:[#allocation4 + %s454]]
        %s456 = scalar_lea.vmem [#allocation5], %s455
        %v457 = vld [vmem:[%s456] sm:$0x1]
        %458 = vst [vmem:[#allocation2 + $0x5] sm:$0x1] %v457
        %s459 = sadd.s32 %s429, 6
        %s460 = sld [smem:[#allocation4 + %s459]]
        %s461 = scalar_lea.vmem [#allocation5], %s460
        %v462 = vld [vmem:[%s461] sm:$0x1]
        %463 = vst [vmem:[#allocation2 + $0x6] sm:$0x1] %v462
        %s464 = sadd.s32 %s429, 7
        %s465 = sld [smem:[#allocation4 + %s464]]
        %s466 = scalar_lea.vmem [#allocation5], %s465
        %v467 = vld [vmem:[%s466] sm:$0x1]
        %468 = vst [vmem:[#allocation2 + $0x7] sm:$0x1] %v467
        %v469 = vld [vmem:[#allocation2] sm:$0xff]
        %v470 = vld [vmem:[%s8] sm:$0x1]
        %v471 = vld [vmem:[#allocation8] sm:$0xf]
        %v472 = vld [vmem:[#allocation8 + $0x4] sm:$0xf]
        %v473 = vld [vmem:[#allocation8 + $0x8] sm:$0xf]
        %v474 = vld [vmem:[#allocation8 + $0xc] sm:$0xf]
        %v475 = vld [vmem:[#allocation8 + $0x10] sm:$0xf]
        %v476 = vld [vmem:[#allocation8 + $0x14] sm:$0xf]
        %v477 = vld [vmem:[#allocation8 + $0x18] sm:$0xf]
        %v478 = vld [vmem:[#allocation8 + $0x1c] sm:$0xf]
        %v479 = vld [vmem:[#allocation8 + $0x20] sm:$0xf]
        %v480 = vld [vmem:[#allocation8 + $0x24] sm:$0xf]
        %v481 = vld [vmem:[#allocation8 + $0x28] sm:$0xf]
        %v482 = vld [vmem:[#allocation8 + $0x2c] sm:$0xf]
        %v483 = vld [vmem:[#allocation8 + $0x30] sm:$0xf]
        %v484 = vld [vmem:[#allocation8 + $0x34] sm:$0xf]
        %v485 = vld [vmem:[#allocation8 + $0x38] sm:$0xf]
        %v486 = vld [vmem:[#allocation8 + $0x3c] sm:$0xf]
        %v487 = vunpack.c.l.bf16 %v471
        %v488 = vunpack.c.l.bf16 %v472
        %v489 = vunpack.c.l.bf16 %v473
        %v490 = vunpack.c.l.bf16 %v474
        %v491 = vunpack.c.l.bf16 %v475
        %v492 = vunpack.c.l.bf16 %v476
        %v493 = vunpack.c.l.bf16 %v477
        %v494 = vunpack.c.l.bf16 %v478
        %v495 = vunpack.c.l.bf16 %v479
        %v496 = vunpack.c.l.bf16 %v480
        %v497 = vunpack.c.l.bf16 %v481
        %v498 = vunpack.c.l.bf16 %v482
        %v499 = vunpack.c.l.bf16 %v483
        %v500 = vunpack.c.l.bf16 %v484
        %v501 = vunpack.c.l.bf16 %v485
        %v502 = vunpack.c.l.bf16 %v486
        %v503 = vld [vmem:[#allocation8 + $0x40] sm:$0xf]
        %v504 = vld [vmem:[#allocation8 + $0x44] sm:$0xf]
        %v505 = vld [vmem:[#allocation8 + $0x48] sm:$0xf]
        %v506 = vld [vmem:[#allocation8 + $0x4c] sm:$0xf]
        %v507 = vld [vmem:[#allocation8 + $0x50] sm:$0xf]
        %v508 = vld [vmem:[#allocation8 + $0x54] sm:$0xf]
        %v509 = vld [vmem:[#allocation8 + $0x58] sm:$0xf]
        %v510 = vld [vmem:[#allocation8 + $0x5c] sm:$0xf]
        %v511 = vld [vmem:[#allocation8 + $0x60] sm:$0xf]
        %v512 = vld [vmem:[#allocation8 + $0x64] sm:$0xf]
        %v513 = vld [vmem:[#allocation8 + $0x68] sm:$0xf]
        %v514 = vld [vmem:[#allocation8 + $0x6c] sm:$0xf]
        %v515 = vld [vmem:[#allocation8 + $0x70] sm:$0xf]
        %v516 = vld [vmem:[#allocation8 + $0x74] sm:$0xf]
        %v517 = vld [vmem:[#allocation8 + $0x78] sm:$0xf]
        %v518 = vld [vmem:[#allocation8 + $0x7c] sm:$0xf]
        %v519 = vunpack.c.l.bf16 %v503
        %v520 = vunpack.c.l.bf16 %v504
        %v521 = vunpack.c.l.bf16 %v505
        %v522 = vunpack.c.l.bf16 %v506
        %v523 = vunpack.c.l.bf16 %v507
        %v524 = vunpack.c.l.bf16 %v508
        %v525 = vunpack.c.l.bf16 %v509
        %v526 = vunpack.c.l.bf16 %v510
        %v527 = vunpack.c.l.bf16 %v511
        %v528 = vunpack.c.l.bf16 %v512
        %v529 = vunpack.c.l.bf16 %v513
        %v530 = vunpack.c.l.bf16 %v514
        %v531 = vunpack.c.l.bf16 %v515
        %v532 = vunpack.c.l.bf16 %v516
        %v533 = vunpack.c.l.bf16 %v517
        %v534 = vunpack.c.l.bf16 %v518
        %535 = vmatprep.subr.mxu0 0.0
        %536 = vmatpush1.msra.mxu0 %v534
        %537 = vmatprep.subr.mxu0 0.0
        %538 = vmatpush1.msra.mxu0 %v533
        %539 = vmatprep.subr.mxu0 0.0
        %540 = vmatpush1.msra.mxu0 %v532
        %541 = vmatprep.subr.mxu0 0.0
        %542 = vmatpush1.msra.mxu0 %v531
        %543 = vmatprep.subr.mxu0 0.0
        %544 = vmatpush1.msra.mxu0 %v530
        %545 = vmatprep.subr.mxu0 0.0
        %546 = vmatpush1.msra.mxu0 %v529
        %547 = vmatprep.subr.mxu0 0.0
        %548 = vmatpush1.msra.mxu0 %v528
        %549 = vmatprep.subr.mxu0 0.0
        %550 = vmatpush1.msra.mxu0 %v527
        %551 = vmatprep.subr.mxu0 0.0
        %552 = vmatpush1.msra.mxu0 %v526
        %553 = vmatprep.subr.mxu0 0.0
        %554 = vmatpush1.msra.mxu0 %v525
        %555 = vmatprep.subr.mxu0 0.0
        %556 = vmatpush1.msra.mxu0 %v524
        %557 = vmatprep.subr.mxu0 0.0
        %558 = vmatpush1.msra.mxu0 %v523
        %559 = vmatprep.subr.mxu0 0.0
        %560 = vmatpush1.msra.mxu0 %v522
        %561 = vmatprep.subr.mxu0 0.0
        %562 = vmatpush1.msra.mxu0 %v521
        %563 = vmatprep.subr.mxu0 0.0
        %564 = vmatpush1.msra.mxu0 %v520
        %565 = vmatprep.subr.mxu0 0.0
        %566 = vmatpush1.msra.mxu0 %v519
        %567 = vmatprep.subr.mxu0 0.0
        %568 = vmatpush2.msra.mxu0 0.0
        %569 = vmatprep.subr.mxu0 0.0
        %570 = vmatpush2.msra.mxu0 0.0
        %571 = vmatprep.subr.mxu0 0.0
        %572 = vmatpush2.msra.mxu0 0.0
        %573 = vmatprep.subr.mxu0 0.0
        %574 = vmatpush2.msra.mxu0 0.0
        %575 = vmatprep.subr.mxu0 0.0
        %576 = vmatpush2.msra.mxu0 0.0
        %577 = vmatprep.subr.mxu0 0.0
        %578 = vmatpush2.msra.mxu0 0.0
        %579 = vmatprep.subr.mxu0 0.0
        %580 = vmatpush2.msra.mxu0 0.0
        %581 = vmatprep.subr.mxu0 0.0
        %582 = vmatpush2.msra.mxu0 0.0
        %583 = vmatprep.subr.mxu0 0.0
        %584 = vmatpush2.msra.mxu0 0.0
        %585 = vmatprep.subr.mxu0 0.0
        %586 = vmatpush2.msra.mxu0 0.0
        %587 = vmatprep.subr.mxu0 0.0
        %588 = vmatpush2.msra.mxu0 0.0
        %589 = vmatprep.subr.mxu0 0.0
        %590 = vmatpush2.msra.mxu0 0.0
        %591 = vmatprep.subr.mxu0 0.0
        %592 = vmatpush2.msra.mxu0 0.0
        %593 = vmatprep.subr.mxu0 0.0
        %594 = vmatpush2.msra.mxu0 0.0
        %595 = vmatprep.subr.mxu0 0.0
        %596 = vmatpush2.msra.mxu0 0.0
        %597 = vmatprep.subr.mxu0 0.0
        %598 = vmatpush2.msra.mxu0 0.0
        %599 = vmatprep.mubr.f32.mxu0 0.0
        %600 = vmatmul.mubr.f32.gmra.mxu0 %v470
        %v601 = vpop.f32.mrf.mxu0
        %v602 = vadd.f32 0.0, %v601
        %v603 = vpop.f32.mrf.mxu0
        %604 = vdwg.mxu0
        %v605 = vlaneseq
        %v606 = vshrl.u32 %v605, 7
        %v607 = vsub.s32 0, %v606
        %v608 = vrot.slane %v602, %v607
        %609 = vmatprep.subr.mxu0 0.0
        %610 = vmatpush1.msra.mxu0 %v502
        %611 = vmatprep.subr.mxu0 0.0
        %612 = vmatpush1.msra.mxu0 %v501
        %613 = vmatprep.subr.mxu0 0.0
        %614 = vmatpush1.msra.mxu0 %v500
        %615 = vmatprep.subr.mxu0 0.0
        %616 = vmatpush1.msra.mxu0 %v499
        %617 = vmatprep.subr.mxu0 0.0
        %618 = vmatpush1.msra.mxu0 %v498
        %619 = vmatprep.subr.mxu0 0.0
        %620 = vmatpush1.msra.mxu0 %v497
        %621 = vmatprep.subr.mxu0 0.0
        %622 = vmatpush1.msra.mxu0 %v496
        %623 = vmatprep.subr.mxu0 0.0
        %624 = vmatpush1.msra.mxu0 %v495
        %625 = vmatprep.subr.mxu0 0.0
        %626 = vmatpush1.msra.mxu0 %v494
        %627 = vmatprep.subr.mxu0 0.0
        %628 = vmatpush1.msra.mxu0 %v493
        %629 = vmatprep.subr.mxu0 0.0
        %630 = vmatpush1.msra.mxu0 %v492
        %631 = vmatprep.subr.mxu0 0.0
        %632 = vmatpush1.msra.mxu0 %v491
        %633 = vmatprep.subr.mxu0 0.0
        %634 = vmatpush1.msra.mxu0 %v490
        %635 = vmatprep.subr.mxu0 0.0
        %636 = vmatpush1.msra.mxu0 %v489
        %637 = vmatprep.subr.mxu0 0.0
        %638 = vmatpush1.msra.mxu0 %v488
        %639 = vmatprep.subr.mxu0 0.0
        %640 = vmatpush1.msra.mxu0 %v487
        %641 = vmatprep.subr.mxu0 0.0
        %642 = vmatpush2.msra.mxu0 0.0
        %643 = vmatprep.subr.mxu0 0.0
        %644 = vmatpush2.msra.mxu0 0.0
        %645 = vmatprep.subr.mxu0 0.0
        %646 = vmatpush2.msra.mxu0 0.0
        %647 = vmatprep.subr.mxu0 0.0
        %648 = vmatpush2.msra.mxu0 0.0
        %649 = vmatprep.subr.mxu0 0.0
        %650 = vmatpush2.msra.mxu0 0.0
        %651 = vmatprep.subr.mxu0 0.0
        %652 = vmatpush2.msra.mxu0 0.0
        %653 = vmatprep.subr.mxu0 0.0
        %654 = vmatpush2.msra.mxu0 0.0
        %655 = vmatprep.subr.mxu0 0.0
        %656 = vmatpush2.msra.mxu0 0.0
        %657 = vmatprep.subr.mxu0 0.0
        %658 = vmatpush2.msra.mxu0 0.0
        %659 = vmatprep.subr.mxu0 0.0
        %660 = vmatpush2.msra.mxu0 0.0
        %661 = vmatprep.subr.mxu0 0.0
        %662 = vmatpush2.msra.mxu0 0.0
        %663 = vmatprep.subr.mxu0 0.0
        %664 = vmatpush2.msra.mxu0 0.0
        %665 = vmatprep.subr.mxu0 0.0
        %666 = vmatpush2.msra.mxu0 0.0
        %667 = vmatprep.subr.mxu0 0.0
        %668 = vmatpush2.msra.mxu0 0.0
        %669 = vmatprep.subr.mxu0 0.0
        %670 = vmatpush2.msra.mxu0 0.0
        %671 = vmatprep.subr.mxu0 0.0
        %672 = vmatpush2.msra.mxu0 0.0
        %673 = vmatprep.mubr.f32.mxu0 0.0
        %674 = vmatmul.mubr.f32.gmra.mxu0 %v469
        %v675 = vpop.f32.mrf.mxu0
        %v676 = vadd.f32 %v608, %v675
        %v677 = vpop.f32.mrf.mxu0
        %678 = vdwg.mxu0
        %v679 = vld [vmem:[%s5] sm:$0x1]
        %v681 = vlaneseq
        %v682 = vshrl.u32 %v681, 7
        %v683 = vsub.s32 0, %v682
        %v684 = vrot.slane %v679, %v683
        %v686 = vadd.f32 %v676, %v684
        %v687 = vlaneseq
        %v688 = vand.u32 %v687, 127
        %vm689 = vcmp.lt.s32.totalorder %v688, 10
        %v690 = vsel %vm689, %v686, -1e+30
        %691 = vmax.xlane.f32.xlu0 %v690
        %v692 = vpop.xlane.xlu0 %691
        %v693 = vsub.f32 %v690, %v692
        %v694 = vmul.f32 %v693, 1.442695
        %v695 = vpow.pop %v694
        %696 = vadd.xlane.f32.xlu0 %v695
        %v697 = vpop.xlane.xlu0 %696
        %v698 = vrcp.pop %v697
        %v699 = vmul.f32 %v695, %v698
        %700 = vst [vmem:[%s428] sm:$0xff] %v699
        %v701 = vld [vmem:[#allocation13] sm:$0xf]
        %v702 = vld [vmem:[#allocation13 + $0x4] sm:$0xf]
        %v703 = vld [vmem:[#allocation13 + $0x8] sm:$0xf]
        %v704 = vld [vmem:[#allocation13 + $0xc] sm:$0xf]
        %v705 = vld [vmem:[#allocation13 + $0x10] sm:$0xf]
        %v706 = vld [vmem:[#allocation13 + $0x14] sm:$0xf]
        %v707 = vld [vmem:[#allocation13 + $0x18] sm:$0xf]
        %v708 = vld [vmem:[#allocation13 + $0x1c] sm:$0xf]
        %v709 = vld [vmem:[#allocation13 + $0x20] sm:$0xf]
        %v710 = vld [vmem:[#allocation13 + $0x24] sm:$0xf]
        %v711 = vld [vmem:[#allocation13 + $0x28] sm:$0xf]
        %v712 = vld [vmem:[#allocation13 + $0x2c] sm:$0xf]
        %v713 = vld [vmem:[#allocation13 + $0x30] sm:$0xf]
        %v714 = vld [vmem:[#allocation13 + $0x34] sm:$0xf]
        %v715 = vld [vmem:[#allocation13 + $0x38] sm:$0xf]
        %v716 = vld [vmem:[#allocation13 + $0x3c] sm:$0xf]
        %v717 = vunpack.c.l.bf16 %v701
        %v718 = vunpack.c.l.bf16 %v702
        %v719 = vunpack.c.l.bf16 %v703
        %v720 = vunpack.c.l.bf16 %v704
        %v721 = vunpack.c.l.bf16 %v705
        %v722 = vunpack.c.l.bf16 %v706
        %v723 = vunpack.c.l.bf16 %v707
        %v724 = vunpack.c.l.bf16 %v708
        %v725 = vunpack.c.l.bf16 %v709
        %v726 = vunpack.c.l.bf16 %v710
        %v727 = vunpack.c.l.bf16 %v711
        %v728 = vunpack.c.l.bf16 %v712
        %v729 = vunpack.c.l.bf16 %v713
        %v730 = vunpack.c.l.bf16 %v714
        %v731 = vunpack.c.l.bf16 %v715
        %v732 = vunpack.c.l.bf16 %v716
        %733 = vmatprep.subr.mxu0 0.0
        %734 = vmatpush1.msra.mxu0 %v732
        %735 = vmatprep.subr.mxu0 0.0
        %736 = vmatpush1.msra.mxu0 %v731
        %737 = vmatprep.subr.mxu0 0.0
        %738 = vmatpush1.msra.mxu0 %v730
        %739 = vmatprep.subr.mxu0 0.0
        %740 = vmatpush1.msra.mxu0 %v729
        %741 = vmatprep.subr.mxu0 0.0
        %742 = vmatpush1.msra.mxu0 %v728
        %743 = vmatprep.subr.mxu0 0.0
        %744 = vmatpush1.msra.mxu0 %v727
        %745 = vmatprep.subr.mxu0 0.0
        %746 = vmatpush1.msra.mxu0 %v726
        %747 = vmatprep.subr.mxu0 0.0
        %748 = vmatpush1.msra.mxu0 %v725
        %749 = vmatprep.subr.mxu0 0.0
        %750 = vmatpush1.msra.mxu0 %v724
        %751 = vmatprep.subr.mxu0 0.0
        %752 = vmatpush1.msra.mxu0 %v723
        %753 = vmatprep.subr.mxu0 0.0
        %754 = vmatpush1.msra.mxu0 %v722
        %755 = vmatprep.subr.mxu0 0.0
        %756 = vmatpush1.msra.mxu0 %v721
        %757 = vmatprep.subr.mxu0 0.0
        %758 = vmatpush1.msra.mxu0 %v720
        %759 = vmatprep.subr.mxu0 0.0
        %760 = vmatpush1.msra.mxu0 %v719
        %761 = vmatprep.subr.mxu0 0.0
        %762 = vmatpush1.msra.mxu0 %v718
        %763 = vmatprep.subr.mxu0 0.0
        %764 = vmatpush1.msra.mxu0 %v717
        %765 = vmatprep.subr.mxu0 0.0
        %766 = vmatpush2.msra.mxu0 0.0
        %767 = vmatprep.subr.mxu0 0.0
        %768 = vmatpush2.msra.mxu0 0.0
        %769 = vmatprep.subr.mxu0 0.0
        %770 = vmatpush2.msra.mxu0 0.0
        %771 = vmatprep.subr.mxu0 0.0
        %772 = vmatpush2.msra.mxu0 0.0
        %773 = vmatprep.subr.mxu0 0.0
        %774 = vmatpush2.msra.mxu0 0.0
        %775 = vmatprep.subr.mxu0 0.0
        %776 = vmatpush2.msra.mxu0 0.0
        %777 = vmatprep.subr.mxu0 0.0
        %778 = vmatpush2.msra.mxu0 0.0
        %779 = vmatprep.subr.mxu0 0.0
        %780 = vmatpush2.msra.mxu0 0.0
        %781 = vmatprep.subr.mxu0 0.0
        %782 = vmatpush2.msra.mxu0 0.0
        %783 = vmatprep.subr.mxu0 0.0
        %784 = vmatpush2.msra.mxu0 0.0
        %785 = vmatprep.subr.mxu0 0.0
        %786 = vmatpush2.msra.mxu0 0.0
        %787 = vmatprep.subr.mxu0 0.0
        %788 = vmatpush2.msra.mxu0 0.0
        %789 = vmatprep.subr.mxu0 0.0
        %790 = vmatpush2.msra.mxu0 0.0
        %791 = vmatprep.subr.mxu0 0.0
        %792 = vmatpush2.msra.mxu0 0.0
        %793 = vmatprep.subr.mxu0 0.0
        %794 = vmatpush2.msra.mxu0 0.0
        %795 = vmatprep.subr.mxu0 0.0
        %796 = vmatpush2.msra.mxu0 0.0
        %797 = vmatprep.mubr.f32.mxu0 0.0
        %798 = vmatmul.mubr.f32.gmra.mxu0 %v699
        %v799 = vpop.f32.mrf.mxu0
        %v800 = vadd.f32 0.0, %v799
        %v801 = vpop.f32.mrf.mxu0
        %802 = vdwg.mxu0
        %v803 = vld [vmem:[#allocation10] sm:$0xf]
        %v804 = vld [vmem:[#allocation10 + $0x4] sm:$0xf]
        %v805 = vld [vmem:[#allocation10 + $0x8] sm:$0xf]
        %v806 = vld [vmem:[#allocation10 + $0xc] sm:$0xf]
        %v807 = vld [vmem:[#allocation10 + $0x10] sm:$0xf]
        %v808 = vld [vmem:[#allocation10 + $0x14] sm:$0xf]
        %v809 = vld [vmem:[#allocation10 + $0x18] sm:$0xf]
        %v810 = vld [vmem:[#allocation10 + $0x1c] sm:$0xf]
        %v811 = vld [vmem:[#allocation10 + $0x20] sm:$0xf]
        %v812 = vld [vmem:[#allocation10 + $0x24] sm:$0xf]
        %v813 = vld [vmem:[#allocation10 + $0x28] sm:$0xf]
        %v814 = vld [vmem:[#allocation10 + $0x2c] sm:$0xf]
        %v815 = vld [vmem:[#allocation10 + $0x30] sm:$0xf]
        %v816 = vld [vmem:[#allocation10 + $0x34] sm:$0xf]
        %v817 = vld [vmem:[#allocation10 + $0x38] sm:$0xf]
        %v818 = vld [vmem:[#allocation10 + $0x3c] sm:$0xf]
        %v819 = vunpack.c.l.bf16 %v803
        %v820 = vunpack.c.l.bf16 %v804
        %v821 = vunpack.c.l.bf16 %v805
        %v822 = vunpack.c.l.bf16 %v806
        %v823 = vunpack.c.l.bf16 %v807
        %v824 = vunpack.c.l.bf16 %v808
        %v825 = vunpack.c.l.bf16 %v809
        %v826 = vunpack.c.l.bf16 %v810
        %v827 = vunpack.c.l.bf16 %v811
        %v828 = vunpack.c.l.bf16 %v812
        %v829 = vunpack.c.l.bf16 %v813
        %v830 = vunpack.c.l.bf16 %v814
        %v831 = vunpack.c.l.bf16 %v815
        %v832 = vunpack.c.l.bf16 %v816
        %v833 = vunpack.c.l.bf16 %v817
        %v834 = vunpack.c.l.bf16 %v818
        %v835 = vld [vmem:[#allocation10 + $0x40] sm:$0xf]
        %v836 = vld [vmem:[#allocation10 + $0x44] sm:$0xf]
        %v837 = vld [vmem:[#allocation10 + $0x48] sm:$0xf]
        %v838 = vld [vmem:[#allocation10 + $0x4c] sm:$0xf]
        %v839 = vld [vmem:[#allocation10 + $0x50] sm:$0xf]
        %v840 = vld [vmem:[#allocation10 + $0x54] sm:$0xf]
        %v841 = vld [vmem:[#allocation10 + $0x58] sm:$0xf]
        %v842 = vld [vmem:[#allocation10 + $0x5c] sm:$0xf]
        %v843 = vld [vmem:[#allocation10 + $0x60] sm:$0xf]
        %v844 = vld [vmem:[#allocation10 + $0x64] sm:$0xf]
        %v845 = vld [vmem:[#allocation10 + $0x68] sm:$0xf]
        %v846 = vld [vmem:[#allocation10 + $0x6c] sm:$0xf]
        %v847 = vld [vmem:[#allocation10 + $0x70] sm:$0xf]
        %v848 = vld [vmem:[#allocation10 + $0x74] sm:$0xf]
        %v849 = vld [vmem:[#allocation10 + $0x78] sm:$0xf]
        %v850 = vld [vmem:[#allocation10 + $0x7c] sm:$0xf]
        %v851 = vunpack.c.l.bf16 %v835
        %v852 = vunpack.c.l.bf16 %v836
        %v853 = vunpack.c.l.bf16 %v837
        %v854 = vunpack.c.l.bf16 %v838
        %v855 = vunpack.c.l.bf16 %v839
        %v856 = vunpack.c.l.bf16 %v840
        %v857 = vunpack.c.l.bf16 %v841
        %v858 = vunpack.c.l.bf16 %v842
        %v859 = vunpack.c.l.bf16 %v843
        %v860 = vunpack.c.l.bf16 %v844
        %v861 = vunpack.c.l.bf16 %v845
        %v862 = vunpack.c.l.bf16 %v846
        %v863 = vunpack.c.l.bf16 %v847
        %v864 = vunpack.c.l.bf16 %v848
        %v865 = vunpack.c.l.bf16 %v849
        %v866 = vunpack.c.l.bf16 %v850
        %867 = vmatprep.subr.mxu0 0.0
        %868 = vmatpush1.msra.mxu0 %v866
        %869 = vmatprep.subr.mxu0 0.0
        %870 = vmatpush1.msra.mxu0 %v865
        %871 = vmatprep.subr.mxu0 0.0
        %872 = vmatpush1.msra.mxu0 %v864
        %873 = vmatprep.subr.mxu0 0.0
        %874 = vmatpush1.msra.mxu0 %v863
        %875 = vmatprep.subr.mxu0 0.0
        %876 = vmatpush1.msra.mxu0 %v862
        %877 = vmatprep.subr.mxu0 0.0
        %878 = vmatpush1.msra.mxu0 %v861
        %879 = vmatprep.subr.mxu0 0.0
        %880 = vmatpush1.msra.mxu0 %v860
        %881 = vmatprep.subr.mxu0 0.0
        %882 = vmatpush1.msra.mxu0 %v859
        %883 = vmatprep.subr.mxu0 0.0
        %884 = vmatpush1.msra.mxu0 %v858
        %885 = vmatprep.subr.mxu0 0.0
        %886 = vmatpush1.msra.mxu0 %v857
        %887 = vmatprep.subr.mxu0 0.0
        %888 = vmatpush1.msra.mxu0 %v856
        %889 = vmatprep.subr.mxu0 0.0
        %890 = vmatpush1.msra.mxu0 %v855
        %891 = vmatprep.subr.mxu0 0.0
        %892 = vmatpush1.msra.mxu0 %v854
        %893 = vmatprep.subr.mxu0 0.0
        %894 = vmatpush1.msra.mxu0 %v853
        %895 = vmatprep.subr.mxu0 0.0
        %896 = vmatpush1.msra.mxu0 %v852
        %897 = vmatprep.subr.mxu0 0.0
        %898 = vmatpush1.msra.mxu0 %v851
        %899 = vmatprep.subr.mxu0 0.0
        %900 = vmatpush2.msra.mxu0 0.0
        %901 = vmatprep.subr.mxu0 0.0
        %902 = vmatpush2.msra.mxu0 0.0
        %903 = vmatprep.subr.mxu0 0.0
        %904 = vmatpush2.msra.mxu0 0.0
        %905 = vmatprep.subr.mxu0 0.0
        %906 = vmatpush2.msra.mxu0 0.0
        %907 = vmatprep.subr.mxu0 0.0
        %908 = vmatpush2.msra.mxu0 0.0
        %909 = vmatprep.subr.mxu0 0.0
        %910 = vmatpush2.msra.mxu0 0.0
        %911 = vmatprep.subr.mxu0 0.0
        %912 = vmatpush2.msra.mxu0 0.0
        %913 = vmatprep.subr.mxu0 0.0
        %914 = vmatpush2.msra.mxu0 0.0
        %915 = vmatprep.subr.mxu0 0.0
        %916 = vmatpush2.msra.mxu0 0.0
        %917 = vmatprep.subr.mxu0 0.0
        %918 = vmatpush2.msra.mxu0 0.0
        %919 = vmatprep.subr.mxu0 0.0
        %920 = vmatpush2.msra.mxu0 0.0
        %921 = vmatprep.subr.mxu0 0.0
        %922 = vmatpush2.msra.mxu0 0.0
        %923 = vmatprep.subr.mxu0 0.0
        %924 = vmatpush2.msra.mxu0 0.0
        %925 = vmatprep.subr.mxu0 0.0
        %926 = vmatpush2.msra.mxu0 0.0
        %927 = vmatprep.subr.mxu0 0.0
        %928 = vmatpush2.msra.mxu0 0.0
        %929 = vmatprep.subr.mxu0 0.0
        %930 = vmatpush2.msra.mxu0 0.0
        %931 = vmatprep.mubr.f32.mxu0 0.0
        %932 = vmatmul.mubr.f32.gmra.mxu0 %v800
        %v933 = vpop.f32.mrf.mxu0
        %v934 = vadd.f32 0.0, %v933
        %v935 = vpop.f32.mrf.mxu0
        %936 = vdwg.mxu0
        %937 = vmatprep.subr.mxu0 0.0
        %938 = vmatpush1.msra.mxu0 %v834
        %939 = vmatprep.subr.mxu0 0.0
        %940 = vmatpush1.msra.mxu0 %v833
        %941 = vmatprep.subr.mxu0 0.0
        %942 = vmatpush1.msra.mxu0 %v832
        %943 = vmatprep.subr.mxu0 0.0
        %944 = vmatpush1.msra.mxu0 %v831
        %945 = vmatprep.subr.mxu0 0.0
        %946 = vmatpush1.msra.mxu0 %v830
        %947 = vmatprep.subr.mxu0 0.0
        %948 = vmatpush1.msra.mxu0 %v829
        %949 = vmatprep.subr.mxu0 0.0
        %950 = vmatpush1.msra.mxu0 %v828
        %951 = vmatprep.subr.mxu0 0.0
        %952 = vmatpush1.msra.mxu0 %v827
        %953 = vmatprep.subr.mxu0 0.0
        %954 = vmatpush1.msra.mxu0 %v826
        %955 = vmatprep.subr.mxu0 0.0
        %956 = vmatpush1.msra.mxu0 %v825
        %957 = vmatprep.subr.mxu0 0.0
        %958 = vmatpush1.msra.mxu0 %v824
        %959 = vmatprep.subr.mxu0 0.0
        %960 = vmatpush1.msra.mxu0 %v823
        %961 = vmatprep.subr.mxu0 0.0
        %962 = vmatpush1.msra.mxu0 %v822
        %963 = vmatprep.subr.mxu0 0.0
        %964 = vmatpush1.msra.mxu0 %v821
        %965 = vmatprep.subr.mxu0 0.0
        %966 = vmatpush1.msra.mxu0 %v820
        %967 = vmatprep.subr.mxu0 0.0
        %968 = vmatpush1.msra.mxu0 %v819
        %969 = vmatprep.subr.mxu0 0.0
        %970 = vmatpush2.msra.mxu0 0.0
        %971 = vmatprep.subr.mxu0 0.0
        %972 = vmatpush2.msra.mxu0 0.0
        %973 = vmatprep.subr.mxu0 0.0
        %974 = vmatpush2.msra.mxu0 0.0
        %975 = vmatprep.subr.mxu0 0.0
        %976 = vmatpush2.msra.mxu0 0.0
        %977 = vmatprep.subr.mxu0 0.0
        %978 = vmatpush2.msra.mxu0 0.0
        %979 = vmatprep.subr.mxu0 0.0
        %980 = vmatpush2.msra.mxu0 0.0
        %981 = vmatprep.subr.mxu0 0.0
        %982 = vmatpush2.msra.mxu0 0.0
        %983 = vmatprep.subr.mxu0 0.0
        %984 = vmatpush2.msra.mxu0 0.0
        %985 = vmatprep.subr.mxu0 0.0
        %986 = vmatpush2.msra.mxu0 0.0
        %987 = vmatprep.subr.mxu0 0.0
        %988 = vmatpush2.msra.mxu0 0.0
        %989 = vmatprep.subr.mxu0 0.0
        %990 = vmatpush2.msra.mxu0 0.0
        %991 = vmatprep.subr.mxu0 0.0
        %992 = vmatpush2.msra.mxu0 0.0
        %993 = vmatprep.subr.mxu0 0.0
        %994 = vmatpush2.msra.mxu0 0.0
        %995 = vmatprep.subr.mxu0 0.0
        %996 = vmatpush2.msra.mxu0 0.0
        %997 = vmatprep.subr.mxu0 0.0
        %998 = vmatpush2.msra.mxu0 0.0
        %999 = vmatprep.subr.mxu0 0.0
        %1000 = vmatpush2.msra.mxu0 0.0
        %1001 = vmatprep.mubr.f32.mxu0 0.0
        %1002 = vmatmul.mubr.f32.gmra.mxu0 %v469
        %v1003 = vpop.f32.mrf.mxu0
        %v1004 = vadd.f32 %v934, %v1003
        %v1005 = vpop.f32.mrf.mxu0
        %1006 = vdwg.mxu0
        %v1007 = vld [vmem:[%s6] sm:$0x1]
        %v1009 = vlaneseq
        %v1010 = vshrl.u32 %v1009, 7
        %v1011 = vsub.s32 0, %v1010
        %v1012 = vrot.slane %v1007, %v1011
        %v1014 = vadd.f32 %v1004, %v1012
        %v1015 = vmax.f32 %v1014, 0.0
        %v1016 = vld [vmem:[#allocation11] sm:$0xf]
        %v1017 = vld [vmem:[#allocation11 + $0x4] sm:$0xf]
        %v1018 = vld [vmem:[#allocation11 + $0x8] sm:$0xf]
        %v1019 = vld [vmem:[#allocation11 + $0xc] sm:$0xf]
        %v1020 = vld [vmem:[#allocation11 + $0x10] sm:$0xf]
        %v1021 = vld [vmem:[#allocation11 + $0x14] sm:$0xf]
        %v1022 = vld [vmem:[#allocation11 + $0x18] sm:$0xf]
        %v1023 = vld [vmem:[#allocation11 + $0x1c] sm:$0xf]
        %v1024 = vld [vmem:[#allocation11 + $0x20] sm:$0xf]
        %v1025 = vld [vmem:[#allocation11 + $0x24] sm:$0xf]
        %v1026 = vld [vmem:[#allocation11 + $0x28] sm:$0xf]
        %v1027 = vld [vmem:[#allocation11 + $0x2c] sm:$0xf]
        %v1028 = vld [vmem:[#allocation11 + $0x30] sm:$0xf]
        %v1029 = vld [vmem:[#allocation11 + $0x34] sm:$0xf]
        %v1030 = vld [vmem:[#allocation11 + $0x38] sm:$0xf]
        %v1031 = vld [vmem:[#allocation11 + $0x3c] sm:$0xf]
        %v1032 = vunpack.c.l.bf16 %v1016
        %v1033 = vunpack.c.l.bf16 %v1017
        %v1034 = vunpack.c.l.bf16 %v1018
        %v1035 = vunpack.c.l.bf16 %v1019
        %v1036 = vunpack.c.l.bf16 %v1020
        %v1037 = vunpack.c.l.bf16 %v1021
        %v1038 = vunpack.c.l.bf16 %v1022
        %v1039 = vunpack.c.l.bf16 %v1023
        %v1040 = vunpack.c.l.bf16 %v1024
        %v1041 = vunpack.c.l.bf16 %v1025
        %v1042 = vunpack.c.l.bf16 %v1026
        %v1043 = vunpack.c.l.bf16 %v1027
        %v1044 = vunpack.c.l.bf16 %v1028
        %v1045 = vunpack.c.l.bf16 %v1029
        %v1046 = vunpack.c.l.bf16 %v1030
        %v1047 = vunpack.c.l.bf16 %v1031
        %v1048 = vld [vmem:[%s7] sm:$0x1]
        %v1050 = vlaneseq
        %v1051 = vshrl.u32 %v1050, 7
        %v1052 = vsub.s32 0, %v1051
        %v1053 = vrot.slane %v1048, %v1052
        %1055 = vmatprep.subr.mxu0 0.0
        %1056 = vmatpush1.msra.mxu0 %v1047
        %1057 = vmatprep.subr.mxu0 0.0
        %1058 = vmatpush1.msra.mxu0 %v1046
        %1059 = vmatprep.subr.mxu0 0.0
        %1060 = vmatpush1.msra.mxu0 %v1045
        %1061 = vmatprep.subr.mxu0 0.0
        %1062 = vmatpush1.msra.mxu0 %v1044
        %1063 = vmatprep.subr.mxu0 0.0
        %1064 = vmatpush1.msra.mxu0 %v1043
        %1065 = vmatprep.subr.mxu0 0.0
        %1066 = vmatpush1.msra.mxu0 %v1042
        %1067 = vmatprep.subr.mxu0 0.0
        %1068 = vmatpush1.msra.mxu0 %v1041
        %1069 = vmatprep.subr.mxu0 0.0
        %1070 = vmatpush1.msra.mxu0 %v1040
        %1071 = vmatprep.subr.mxu0 0.0
        %1072 = vmatpush1.msra.mxu0 %v1039
        %1073 = vmatprep.subr.mxu0 0.0
        %1074 = vmatpush1.msra.mxu0 %v1038
        %1075 = vmatprep.subr.mxu0 0.0
        %1076 = vmatpush1.msra.mxu0 %v1037
        %1077 = vmatprep.subr.mxu0 0.0
        %1078 = vmatpush1.msra.mxu0 %v1036
        %1079 = vmatprep.subr.mxu0 0.0
        %1080 = vmatpush1.msra.mxu0 %v1035
        %1081 = vmatprep.subr.mxu0 0.0
        %1082 = vmatpush1.msra.mxu0 %v1034
        %1083 = vmatprep.subr.mxu0 0.0
        %1084 = vmatpush1.msra.mxu0 %v1033
        %1085 = vmatprep.subr.mxu0 0.0
        %1086 = vmatpush1.msra.mxu0 %v1032
        %1087 = vmatprep.subr.mxu0 0.0
        %1088 = vmatpush2.msra.mxu0 0.0
        %1089 = vmatprep.subr.mxu0 0.0
        %1090 = vmatpush2.msra.mxu0 0.0
        %1091 = vmatprep.subr.mxu0 0.0
        %1092 = vmatpush2.msra.mxu0 0.0
        %1093 = vmatprep.subr.mxu0 0.0
        %1094 = vmatpush2.msra.mxu0 0.0
        %1095 = vmatprep.subr.mxu0 0.0
        %1096 = vmatpush2.msra.mxu0 0.0
        %1097 = vmatprep.subr.mxu0 0.0
        %1098 = vmatpush2.msra.mxu0 0.0
        %1099 = vmatprep.subr.mxu0 0.0
        %1100 = vmatpush2.msra.mxu0 0.0
        %1101 = vmatprep.subr.mxu0 0.0
        %1102 = vmatpush2.msra.mxu0 0.0
        %1103 = vmatprep.subr.mxu0 0.0
        %1104 = vmatpush2.msra.mxu0 0.0
        %1105 = vmatprep.subr.mxu0 0.0
        %1106 = vmatpush2.msra.mxu0 0.0
        %1107 = vmatprep.subr.mxu0 0.0
        %1108 = vmatpush2.msra.mxu0 0.0
        %1109 = vmatprep.subr.mxu0 0.0
        %1110 = vmatpush2.msra.mxu0 0.0
        %1111 = vmatprep.subr.mxu0 0.0
        %1112 = vmatpush2.msra.mxu0 0.0
        %1113 = vmatprep.subr.mxu0 0.0
        %1114 = vmatpush2.msra.mxu0 0.0
        %1115 = vmatprep.subr.mxu0 0.0
        %1116 = vmatpush2.msra.mxu0 0.0
        %1117 = vmatprep.subr.mxu0 0.0
        %1118 = vmatpush2.msra.mxu0 0.0
        %1119 = vmatprep.mubr.f32.mxu0 0.0
        %1120 = vmatmul.mubr.f32.gmra.mxu0 %v1015
        %v1121 = vpop.f32.mrf.mxu0
        %v1122 = vadd.f32 %v1053, %v1121
        %v1123 = vpop.f32.mrf.mxu0
        %1124 = vdwg.mxu0
        %vm1125 = vcmp.lt.s32.totalorder %v688, 64
        %v1126 = vsel %vm1125, %v1122, -1e+30
        %1127 = vmax.xlane.f32.xlu0 %v1126
        %v1128 = vpop.xlane.xlu0 %1127
        %v1129 = vsub.f32 %v1126, %v1128
        %v1130 = vmul.f32 %v1129, 1.442695
        %v1131 = vpow.pop %v1130
        %1132 = vadd.xlane.f32.xlu0 %v1131
        %v1133 = vpop.xlane.xlu0 %1132
        %v1134 = vlog2.pop %v1133
        %v1135 = vmul.f32 %v1134, 0.6931472
        %v1136 = vadd.f32 %v1135, %v1128
        %v1137 = vsub.f32 %v1126, %v1136
        %1138 = vst [vmem:[%s421] sm:$0xff] %v1137
        %s1139 = sand.u32 %s235, 1
        %s1140 = scalar_lea.sflag [#allocation7], %s1139
        %s1141 = sand.u32 %s235, 1
        %s1142 = smul.addr %s1141, 8
        %s1143 = scalar_lea.vmem [#allocation14], %s1142
        %s1144 = sand.u32 %s261, 1
        %s1145 = scalar_lea.sflag [#allocation16], %s1144
        %s1146 = sand.u32 %s261, 1
        %s1147 = smul.addr %s1146, 8
        %s1148 = scalar_lea.vmem [#allocation15], %s1147
        // Predicated region
        $region77: #{forward.1} parent=55 // pred_check
          %p1149 = pneg %p245
        $region78: #{forward.1} parent=55 // pred_check_branch
          %1151 = sbr.rel (%p1149) target = $region80
        $region79: #{forward.1} parent=55 // pred_region
          %s1153 = ssub.s32 128, 128
          %1154 = vsyncadd %s1140, %s1153
          %s1155 = smul.addr %s38, 128
          %s1156 = scalar_lea.hbm %s10, %s1155
          %s1158 = sshll.u32 %s1143, 4
          %s1159 = int_to_ptr.vmem [resolvable:$true] %s1158
          %1161 = dma.vmem_to_hbm [thread:$0]  %s1159, 128, %s1156, %s1140
        $region80: #{forward.1} parent=55 // pred_fallthru
          _
        // Predicated region
        $region81: #{forward.1} parent=55 // pred_check
          %p1162 = pneg %p271
        $region82: #{forward.1} parent=55 // pred_check_branch
          %1164 = sbr.rel (%p1162) target = $region84
        $region83: #{forward.1} parent=55 // pred_region
          %s1166 = ssub.s32 128, 128
          %1167 = vsyncadd %s1145, %s1166
          %s1168 = smul.addr %s38, 128
          %s1169 = scalar_lea.hbm %s11, %s1168
          %s1171 = sshll.u32 %s1148, 4
          %s1172 = int_to_ptr.vmem [resolvable:$true] %s1171
          %1174 = dma.vmem_to_hbm [thread:$0]  %s1172, 128, %s1169, %s1145
        $region84: #{forward.1} parent=55 // pred_fallthru
          _
      $region56: #{forward.1} parent=5 // pred_fallthru
        _
      %p1175 = scmp.le.s32.totalorder 2, %s33
      // Predicated region
      $region85: #{forward.1} parent=5 // pred_check
        %p1176 = pneg %p1175
      $region86: #{forward.1} parent=5 // pred_check_branch
        %1178 = sbr.rel (%p1176) target = $region88
      $region87: #{forward.1} parent=5 // pred_region
        %s1179 = ssub.s32 %s33, 2
        // Predicated region
        $region89: #{forward.1} parent=87 // pred_check
          %p1180 = pneg %p251
        $region90: #{forward.1} parent=87 // pred_check_branch
          %1182 = sbr.rel (%p1180) target = $region92
        $region91: #{forward.1} parent=87 // pred_region
          %s1183 = sand.u32 %s236, 1
          %s1184 = scalar_lea.sflag [#allocation7], %s1183
          %s1185 = sand.u32 %s236, 1
          %s1186 = smul.addr %s1185, 8
          %s1187 = scalar_lea.vmem [#allocation14], %s1186
          %1188 = dma.done %s1184, 128
        $region92: #{forward.1} parent=87 // pred_fallthru
          _
        // Predicated region
        $region93: #{forward.1} parent=87 // pred_check
          %p1189 = pneg %p277
        $region94: #{forward.1} parent=87 // pred_check_branch
          %1191 = sbr.rel (%p1189) target = $region96
        $region95: #{forward.1} parent=87 // pred_region
          %s1192 = sand.u32 %s262, 1
          %s1193 = scalar_lea.sflag [#allocation16], %s1192
          %s1194 = sand.u32 %s262, 1
          %s1195 = smul.addr %s1194, 8
          %s1196 = scalar_lea.vmem [#allocation15], %s1195
          %1197 = dma.done %s1193, 128
        $region96: #{forward.1} parent=87 // pred_fallthru
          _
      $region88: #{forward.1} parent=5 // pred_fallthru
        _
    $region6: #{forward.1} parent=1 // loop_footer
      %s37 = sadd.s32 1, %s33
    $region7: #{forward.1} parent=1 // loop_footer_branch
      %32 = sbr.rel target = $region3
    $region8: #{forward.1} parent=1 // loop_exit
      _
    %1198 = vsyncpa [#allocation6], 1
    %s1199 = scalar_lea.sflag [#allocation6], 1
    %1200 = vsyncpa %s1199, 1
    %1201 = vsyncpa [#allocation9], 1
    %1202 = vsyncpa [#allocation12], 1
    %1203 = vsyncpa [#allocation7], 1
    %s1204 = scalar_lea.sflag [#allocation7], 1
    %1205 = vsyncpa %s1204, 1
    %1206 = vsyncpa [#allocation16], 1
    %s1207 = scalar_lea.sflag [#allocation16], 1
    %1208 = vsyncpa %s1207, 1

</llo_original>
